<compile_context>
chip_gen: v7x
topology: tpu7x:2x2x1
jax: 0.10.0
libtpu: 0.0.40
codegen_flags: <defaults>
</compile_context>

<pallas_src>
import functools

import jax
import jax.numpy as jnp
from jax import lax
from jax.experimental import pallas as pl
from jax.experimental.pallas import tpu as pltpu


# ----------------------------------------------------------------------------
# Fused kernel: stacked LSTM (full sequence, recurrence in-kernel) + head.
# ----------------------------------------------------------------------------
def _fused_rnn_kernel(*refs, num_layers, hidden_size, seq_len, batch):
    H = hidden_size
    T = seq_len
    B = batch

    x_ref = refs[0]                                        # (T*B, D_in)
    layer_refs = refs[1:1 + 3 * num_layers]                # (wih, whh, b) per layer
    (h0_ref, gamma_ref, beta_ref,
     w2_ref, b2_ref) = refs[1 + 3 * num_layers: 6 + 3 * num_layers]
    out_ref = refs[6 + 3 * num_layers]                     # (B, 10)
    hseq_ref = refs[7 + 3 * num_layers] if num_layers > 1 else None  # VMEM (T*B, H)

    # Per-lane prescale so that a single tanh implements both tanh (g gate)
    # and sigmoid (i,f,o gates):  sigmoid(x) = 0.5*tanh(0.5*x) + 0.5.
    lane = lax.broadcasted_iota(jnp.int32, (B, 4 * H), 1)
    is_g = (lane >= 2 * H) & (lane < 3 * H)
    pre = jnp.where(is_g, jnp.float32(1.0), jnp.float32(0.5))   # hoisted once

    h = None
    for l in range(num_layers):
        wih = layer_refs[3 * l][...]                       # (D_in, 4H)
        whh = layer_refs[3 * l + 1][...]                   # (H,    4H)
        b = layer_refs[3 * l + 2][...]                     # (1,    4H) = b_ih + b_hh

        xin = x_ref[...] if l == 0 else hseq_ref[...]      # (T*B, D_in)

        # Hoisted input projection: one MXU matmul for the whole sequence.
        gates_x = jnp.dot(xin, wih,
                          preferred_element_type=jnp.float32) + b   # (T*B, 4H)

        h = h0_ref[l]                                      # (B, H)
        c = h                                              # module sets c0 = h0
        last_layer = (l == num_layers - 1)

        for t in range(T):                                 # static unroll (T small)
            gates = gates_x[t * B:(t + 1) * B, :] + jnp.dot(
                h, whh, preferred_element_type=jnp.float32)          # (B, 4H)
            tg = jnp.tanh(gates * pre)                     # single EUP pass / step
            i_g = 0.5 * tg[:, 0 * H:1 * H] + 0.5
            f_g = 0.5 * tg[:, 1 * H:2 * H] + 0.5
            g_g = tg[:, 2 * H:3 * H]
            o_g = 0.5 * tg[:, 3 * H:4 * H] + 0.5
            c = f_g * c + i_g * g_g
            h = o_g * jnp.tanh(c)
            if not last_layer:
                hseq_ref[t * B:(t + 1) * B, :] = h         # stays in VMEM scratch

    # Head: BatchNorm1d (training-mode, biased variance) + tanh + Linear(H->10).
    mean = jnp.mean(h, axis=0, keepdims=True)
    var = jnp.mean((h - mean) ** 2, axis=0, keepdims=True)
    xn = (h - mean) * lax.rsqrt(var + 1e-5)
    y = jnp.tanh(xn * gamma_ref[...] + beta_ref[...])
    out_ref[...] = jnp.dot(y, w2_ref[...],
                           preferred_element_type=jnp.float32) + b2_ref[...]


# ----------------------------------------------------------------------------
# Parameter init (deterministic; weights pre-transposed / biases pre-fused).
# ----------------------------------------------------------------------------
def init_params(key, input_size, hidden_size, num_layers, out_features=10):
    params = {"lstm": [], "hidden_size": hidden_size, "num_layers": num_layers}
    k = 1.0 / float(hidden_size) ** 0.5
    keys = jax.random.split(key, num_layers * 4 + 2)
    ki = 0
    for l in range(num_layers):
        d_in = input_size if l == 0 else hidden_size
        w_ih = jax.random.uniform(keys[ki], (4 * hidden_size, d_in),
                                  jnp.float32, -k, k); ki += 1
        w_hh = jax.random.uniform(keys[ki], (4 * hidden_size, hidden_size),
                                  jnp.float32, -k, k); ki += 1
        b_ih = jax.random.uniform(keys[ki], (4 * hidden_size,),
                                  jnp.float32, -k, k); ki += 1
        b_hh = jax.random.uniform(keys[ki], (4 * hidden_size,),
                                  jnp.float32, -k, k); ki += 1
        # Pre-transpose once at init (lane-dense gate axis inside the kernel),
        # and fuse the two biases.
        params["lstm"].append((jnp.transpose(w_ih),                 # (d_in, 4H)
                               jnp.transpose(w_hh),                 # (H,    4H)
                               (b_ih + b_hh).reshape(1, 4 * hidden_size)))

    # BatchNorm1d(hidden_size): gamma=1, beta=0
    params["bn"] = (jnp.ones((1, hidden_size), jnp.float32),
                    jnp.zeros((1, hidden_size), jnp.float32))

    # Linear(hidden_size -> 10)
    w2 = jax.random.uniform(keys[ki], (out_features, hidden_size),
                            jnp.float32, -k, k); ki += 1
    b2 = jax.random.uniform(keys[ki], (out_features,), jnp.float32, -k, k)
    params["linear2"] = (jnp.transpose(w2),               # (H, 10) lane-dense matmul
                         b2.reshape(1, out_features))
    return params


# ----------------------------------------------------------------------------
# Forward pass matching rnn.forward(input_, hx): single fused pallas_call.
# ----------------------------------------------------------------------------
def rnn_forward(params, input_, hx_list, *, batch_first=True):
    h0 = jnp.stack(hx_list, axis=0)                        # (L, B, H); c0 = h0
    x = jnp.transpose(input_, (1, 0, 2)) if batch_first else input_   # (T, B, D)
    T, B, D = x.shape
    H = params["hidden_size"]
    L = params["num_layers"]
    x2 = x.reshape(T * B, D)          # flatten time-major rows outside the kernel

    gamma, beta = params["bn"]
    w2_t, b2 = params["linear2"]

    args = [x2]
    for (wih_t, whh_t, b) in params["lstm"]:
        args += [wih_t, whh_t, b]
    args += [h0, gamma, beta, w2_t, b2]

    kernel = functools.partial(_fused_rnn_kernel, num_layers=L,
                               hidden_size=H, seq_len=T, batch=B)
    scratch = [pltpu.VMEM((T * B, H), jnp.float32)] if L > 1 else []

    return pl.pallas_call(
        kernel,
        out_shape=jax.ShapeDtypeStruct((B, w2_t.shape[1]), jnp.float32),
        scratch_shapes=scratch,
    )(*args)


# ----------------------------------------------------------------------------
# Pure-JAX reference (same math, lax.scan LSTM) for a correctness check.
# ----------------------------------------------------------------------------
def _reference_forward(params, input_, hx_list, *, batch_first=True):
    h0 = jnp.stack(hx_list, axis=0)
    x = jnp.transpose(input_, (1, 0, 2)) if batch_first else input_
    H = params["hidden_size"]
    layer_in = x
    h_T = None
    for l, (wih_t, whh_t, b) in enumerate(params["lstm"]):
        def step(carry, x_t):
            h, c = carry
            gates = x_t @ wih_t + h @ whh_t + b
            i = jax.nn.sigmoid(gates[:, 0 * H:1 * H])
            f = jax.nn.sigmoid(gates[:, 1 * H:2 * H])
            g = jnp.tanh(gates[:, 2 * H:3 * H])
            o = jax.nn.sigmoid(gates[:, 3 * H:4 * H])
            c = f * c + i * g
            h = o * jnp.tanh(c)
            return (h, c), h
        (h_T, _), hseq = lax.scan(step, (h0[l], h0[l]), layer_in)
        layer_in = hseq
    gamma, beta = params["bn"]
    w2_t, b2 = params["linear2"]
    mean = jnp.mean(h_T, axis=0, keepdims=True)
    var = jnp.mean((h_T - mean) ** 2, axis=0, keepdims=True)
    y = jnp.tanh((h_T - mean) * lax.rsqrt(var + 1e-5) * gamma + beta)
    return y @ w2_t + b2


if __name__ == "__main__":
    # small shapes consistent with the module (4H = 128 -> lane-dense gate axis)
    batch, seq, input_size, hidden_size_, num_layers = 4, 8, 16, 32, 2

    key = jax.random.PRNGKey(0)
    k_par, k_x, k_h = jax.random.split(key, 3)

    params = init_params(k_par, input_size, hidden_size_, num_layers)

    # batch_first=True input: (B, T, input_size)
    input_ = jax.random.normal(k_x, (batch, seq, input_size), jnp.float32)
    # hx: list of per-layer initial hidden states (B, H), stacked inside forward
    hkeys = jax.random.split(k_h, num_layers)
    hx_list = [jax.random.normal(hkeys[l], (batch, hidden_size_), jnp.float32)
               for l in range(num_layers)]

    out = rnn_forward(params, input_, hx_list, batch_first=True)
    out = jax.block_until_ready(out)
    assert out.shape == (batch, 10) and out.dtype == jnp.float32

    ref = jax.block_until_ready(
        _reference_forward(params, input_, hx_list, batch_first=True))
    assert jnp.allclose(out, ref, atol=1e-4, rtol=1e-4), "mismatch vs JAX reference"

    print("KERNEL_OK")
</pallas_src>

<mosaic_0001>
module attributes {stable_mosaic.version = 11 : i64} {
  func.func @_fused_rnn_kernel(%arg0: memref<32x16xf32, #tpu.memory_space<vmem>>, %arg1: memref<16x128xf32, #tpu.memory_space<vmem>>, %arg2: memref<32x128xf32, #tpu.memory_space<vmem>>, %arg3: memref<1x128xf32, #tpu.memory_space<vmem>>, %arg4: memref<32x128xf32, #tpu.memory_space<vmem>>, %arg5: memref<32x128xf32, #tpu.memory_space<vmem>>, %arg6: memref<1x128xf32, #tpu.memory_space<vmem>>, %arg7: memref<2x4x32xf32, #tpu.memory_space<vmem>>, %arg8: memref<1x32xf32, #tpu.memory_space<vmem>>, %arg9: memref<1x32xf32, #tpu.memory_space<vmem>>, %arg10: memref<32x10xf32, #tpu.memory_space<vmem>>, %arg11: memref<1x10xf32, #tpu.memory_space<vmem>>, %arg12: memref<4x10xf32, #tpu.memory_space<vmem>>, %arg13: memref<32x32xf32, #tpu.memory_space<vmem>>) attributes {dimension_semantics = [], scalar_prefetch = 0 : i64, scratch_operands = 1 : i64, tpu.core_type = #tpu.core_type<tc>} {
    %0 = tpu.iota {dimensions = array<i32: 1>} : vector<4x128xi32>
    %c64_i32 = arith.constant 64 : i32
    %1 = vector.broadcast %c64_i32 : i32 to vector<4x128xi32>
    %2 = arith.cmpi sge, %0, %1 : vector<4x128xi32>
    %c96_i32 = arith.constant 96 : i32
    %3 = vector.broadcast %c96_i32 : i32 to vector<4x128xi32>
    %4 = arith.cmpi slt, %0, %3 : vector<4x128xi32>
    %5 = arith.andi %2, %4 : vector<4x128xi1>
    %cst = arith.constant 1.000000e+00 : f32
    %cst_0 = arith.constant 5.000000e-01 : f32
    %6 = vector.broadcast %cst : f32 to vector<4x128xf32>
    %7 = vector.broadcast %cst_0 : f32 to vector<4x128xf32>
    %8 = arith.select %5, %6, %7 : vector<4x128xi1>, vector<4x128xf32>
    %c0 = arith.constant 0 : index
    %c0_1 = arith.constant 0 : index
    %9 = vector.load %arg1[%c0, %c0_1] : memref<16x128xf32, #tpu.memory_space<vmem>>, vector<16x128xf32>
    %c0_2 = arith.constant 0 : index
    %c0_3 = arith.constant 0 : index
    %10 = vector.load %arg2[%c0_2, %c0_3] : memref<32x128xf32, #tpu.memory_space<vmem>>, vector<32x128xf32>
    %c0_4 = arith.constant 0 : index
    %c0_5 = arith.constant 0 : index
    %11 = vector.load %arg3[%c0_4, %c0_5] : memref<1x128xf32, #tpu.memory_space<vmem>>, vector<1x128xf32>
    %c0_6 = arith.constant 0 : index
    %c0_7 = arith.constant 0 : index
    %12 = vector.load %arg0[%c0_6, %c0_7] : memref<32x16xf32, #tpu.memory_space<vmem>>, vector<32x16xf32>
    %cst_8 = arith.constant dense<0.000000e+00> : vector<32x128xf32>
    %13 = tpu.matmul %12, %9, %cst_8 {dimension_numbers = #tpu.dot_dimension_numbers<[1], [0], [0], [1], [0, 0, 1, 1], [], []>} : vector<32x16xf32>, vector<16x128xf32>, vector<32x128xf32> -> vector<32x128xf32>
    %14 = vector.broadcast %11 : vector<1x128xf32> to vector<32x128xf32>
    %15 = arith.addf %13, %14 : vector<32x128xf32>
    %c0_9 = arith.constant 0 : index
    %c0_10 = arith.constant 0 : index
    %c0_11 = arith.constant 0 : index
    %16 = vector.load %arg7[%c0_9, %c0_10, %c0_11] : memref<2x4x32xf32, #tpu.memory_space<vmem>>, vector<1x4x32xf32>
    %17 = vector.shape_cast %16 : vector<1x4x32xf32> to vector<4x32xf32>
    %18 = vector.extract_strided_slice %15 {offsets = [0, 0], sizes = [4, 128], strides = [1, 1]} : vector<32x128xf32> to vector<4x128xf32>
    %cst_12 = arith.constant dense<0.000000e+00> : vector<4x128xf32>
    %19 = tpu.matmul %17, %10, %cst_12 {dimension_numbers = #tpu.dot_dimension_numbers<[1], [0], [0], [1], [0, 0, 1, 1], [], []>} : vector<4x32xf32>, vector<32x128xf32>, vector<4x128xf32> -> vector<4x128xf32>
    %20 = arith.addf %18, %19 : vector<4x128xf32>
    %21 = arith.mulf %20, %8 : vector<4x128xf32>
    %22 = math.tanh %21 : vector<4x128xf32>
    %23 = vector.extract_strided_slice %22 {offsets = [0, 0], sizes = [4, 32], strides = [1, 1]} : vector<4x128xf32> to vector<4x32xf32>
    %cst_13 = arith.constant 5.000000e-01 : f32
    %24 = vector.broadcast %cst_13 : f32 to vector<4x32xf32>
    %25 = arith.mulf %24, %23 : vector<4x32xf32>
    %cst_14 = arith.constant 5.000000e-01 : f32
    %26 = vector.broadcast %cst_14 : f32 to vector<4x32xf32>
    %27 = arith.addf %25, %26 : vector<4x32xf32>
    %28 = vector.extract_strided_slice %22 {offsets = [0, 32], sizes = [4, 32], strides = [1, 1]} : vector<4x128xf32> to vector<4x32xf32>
    %cst_15 = arith.constant 5.000000e-01 : f32
    %29 = vector.broadcast %cst_15 : f32 to vector<4x32xf32>
    %30 = arith.mulf %29, %28 : vector<4x32xf32>
    %cst_16 = arith.constant 5.000000e-01 : f32
    %31 = vector.broadcast %cst_16 : f32 to vector<4x32xf32>
    %32 = arith.addf %30, %31 : vector<4x32xf32>
    %33 = vector.extract_strided_slice %22 {offsets = [0, 64], sizes = [4, 32], strides = [1, 1]} : vector<4x128xf32> to vector<4x32xf32>
    %34 = vector.extract_strided_slice %22 {offsets = [0, 96], sizes = [4, 32], strides = [1, 1]} : vector<4x128xf32> to vector<4x32xf32>
    %cst_17 = arith.constant 5.000000e-01 : f32
    %35 = vector.broadcast %cst_17 : f32 to vector<4x32xf32>
    %36 = arith.mulf %35, %34 : vector<4x32xf32>
    %cst_18 = arith.constant 5.000000e-01 : f32
    %37 = vector.broadcast %cst_18 : f32 to vector<4x32xf32>
    %38 = arith.addf %36, %37 : vector<4x32xf32>
    %39 = arith.mulf %32, %17 : vector<4x32xf32>
    %40 = arith.mulf %27, %33 : vector<4x32xf32>
    %41 = arith.addf %39, %40 : vector<4x32xf32>
    %42 = math.tanh %41 : vector<4x32xf32>
    %43 = arith.mulf %38, %42 : vector<4x32xf32>
    %c0_19 = arith.constant 0 : index
    %c0_20 = arith.constant 0 : index
    %44 = vector.load %arg13[%c0_19, %c0_20] : memref<32x32xf32, #tpu.memory_space<vmem>>, vector<4x32xf32>
    tpu.vector_store %arg13[%c0_19, %c0_20], %43 {strides = array<i32>} : memref<32x32xf32, #tpu.memory_space<vmem>>, vector<4x32xf32>,
    %45 = vector.extract_strided_slice %15 {offsets = [4, 0], sizes = [4, 128], strides = [1, 1]} : vector<32x128xf32> to vector<4x128xf32>
    %cst_21 = arith.constant dense<0.000000e+00> : vector<4x128xf32>
    %46 = tpu.matmul %43, %10, %cst_21 {dimension_numbers = #tpu.dot_dimension_numbers<[1], [0], [0], [1], [0, 0, 1, 1], [], []>} : vector<4x32xf32>, vector<32x128xf32>, vector<4x128xf32> -> vector<4x128xf32>
    %47 = arith.addf %45, %46 : vector<4x128xf32>
    %48 = arith.mulf %47, %8 : vector<4x128xf32>
    %49 = math.tanh %48 : vector<4x128xf32>
    %50 = vector.extract_strided_slice %49 {offsets = [0, 0], sizes = [4, 32], strides = [1, 1]} : vector<4x128xf32> to vector<4x32xf32>
    %cst_22 = arith.constant 5.000000e-01 : f32
    %51 = vector.broadcast %cst_22 : f32 to vector<4x32xf32>
    %52 = arith.mulf %51, %50 : vector<4x32xf32>
    %cst_23 = arith.constant 5.000000e-01 : f32
    %53 = vector.broadcast %cst_23 : f32 to vector<4x32xf32>
    %54 = arith.addf %52, %53 : vector<4x32xf32>
    %55 = vector.extract_strided_slice %49 {offsets = [0, 32], sizes = [4, 32], strides = [1, 1]} : vector<4x128xf32> to vector<4x32xf32>
    %cst_24 = arith.constant 5.000000e-01 : f32
    %56 = vector.broadcast %cst_24 : f32 to vector<4x32xf32>
    %57 = arith.mulf %56, %55 : vector<4x32xf32>
    %cst_25 = arith.constant 5.000000e-01 : f32
    %58 = vector.broadcast %cst_25 : f32 to vector<4x32xf32>
    %59 = arith.addf %57, %58 : vector<4x32xf32>
    %60 = vector.extract_strided_slice %49 {offsets = [0, 64], sizes = [4, 32], strides = [1, 1]} : vector<4x128xf32> to vector<4x32xf32>
    %61 = vector.extract_strided_slice %49 {offsets = [0, 96], sizes = [4, 32], strides = [1, 1]} : vector<4x128xf32> to vector<4x32xf32>
    %cst_26 = arith.constant 5.000000e-01 : f32
    %62 = vector.broadcast %cst_26 : f32 to vector<4x32xf32>
    %63 = arith.mulf %62, %61 : vector<4x32xf32>
    %cst_27 = arith.constant 5.000000e-01 : f32
    %64 = vector.broadcast %cst_27 : f32 to vector<4x32xf32>
    %65 = arith.addf %63, %64 : vector<4x32xf32>
    %66 = arith.mulf %59, %41 : vector<4x32xf32>
    %67 = arith.mulf %54, %60 : vector<4x32xf32>
    %68 = arith.addf %66, %67 : vector<4x32xf32>
    %69 = math.tanh %68 : vector<4x32xf32>
    %70 = arith.mulf %65, %69 : vector<4x32xf32>
    %c4 = arith.constant 4 : index
    %c0_28 = arith.constant 0 : index
    %71 = vector.load %arg13[%c4, %c0_28] : memref<32x32xf32, #tpu.memory_space<vmem>>, vector<4x32xf32>
    tpu.vector_store %arg13[%c4, %c0_28], %70 {strides = array<i32>} : memref<32x32xf32, #tpu.memory_space<vmem>>, vector<4x32xf32>,
    %72 = vector.extract_strided_slice %15 {offsets = [8, 0], sizes = [4, 128], strides = [1, 1]} : vector<32x128xf32> to vector<4x128xf32>
    %cst_29 = arith.constant dense<0.000000e+00> : vector<4x128xf32>
    %73 = tpu.matmul %70, %10, %cst_29 {dimension_numbers = #tpu.dot_dimension_numbers<[1], [0], [0], [1], [0, 0, 1, 1], [], []>} : vector<4x32xf32>, vector<32x128xf32>, vector<4x128xf32> -> vector<4x128xf32>
    %74 = arith.addf %72, %73 : vector<4x128xf32>
    %75 = arith.mulf %74, %8 : vector<4x128xf32>
    %76 = math.tanh %75 : vector<4x128xf32>
    %77 = vector.extract_strided_slice %76 {offsets = [0, 0], sizes = [4, 32], strides = [1, 1]} : vector<4x128xf32> to vector<4x32xf32>
    %cst_30 = arith.constant 5.000000e-01 : f32
    %78 = vector.broadcast %cst_30 : f32 to vector<4x32xf32>
    %79 = arith.mulf %78, %77 : vector<4x32xf32>
    %cst_31 = arith.constant 5.000000e-01 : f32
    %80 = vector.broadcast %cst_31 : f32 to vector<4x32xf32>
    %81 = arith.addf %79, %80 : vector<4x32xf32>
    %82 = vector.extract_strided_slice %76 {offsets = [0, 32], sizes = [4, 32], strides = [1, 1]} : vector<4x128xf32> to vector<4x32xf32>
    %cst_32 = arith.constant 5.000000e-01 : f32
    %83 = vector.broadcast %cst_32 : f32 to vector<4x32xf32>
    %84 = arith.mulf %83, %82 : vector<4x32xf32>
    %cst_33 = arith.constant 5.000000e-01 : f32
    %85 = vector.broadcast %cst_33 : f32 to vector<4x32xf32>
    %86 = arith.addf %84, %85 : vector<4x32xf32>
    %87 = vector.extract_strided_slice %76 {offsets = [0, 64], sizes = [4, 32], strides = [1, 1]} : vector<4x128xf32> to vector<4x32xf32>
    %88 = vector.extract_strided_slice %76 {offsets = [0, 96], sizes = [4, 32], strides = [1, 1]} : vector<4x128xf32> to vector<4x32xf32>
    %cst_34 = arith.constant 5.000000e-01 : f32
    %89 = vector.broadcast %cst_34 : f32 to vector<4x32xf32>
    %90 = arith.mulf %89, %88 : vector<4x32xf32>
    %cst_35 = arith.constant 5.000000e-01 : f32
    %91 = vector.broadcast %cst_35 : f32 to vector<4x32xf32>
    %92 = arith.addf %90, %91 : vector<4x32xf32>
    %93 = arith.mulf %86, %68 : vector<4x32xf32>
    %94 = arith.mulf %81, %87 : vector<4x32xf32>
    %95 = arith.addf %93, %94 : vector<4x32xf32>
    %96 = math.tanh %95 : vector<4x32xf32>
    %97 = arith.mulf %92, %96 : vector<4x32xf32>
    %c8 = arith.constant 8 : index
    %c0_36 = arith.constant 0 : index
    %98 = vector.load %arg13[%c8, %c0_36] : memref<32x32xf32, #tpu.memory_space<vmem>>, vector<4x32xf32>
    tpu.vector_store %arg13[%c8, %c0_36], %97 {strides = array<i32>} : memref<32x32xf32, #tpu.memory_space<vmem>>, vector<4x32xf32>,
    %99 = vector.extract_strided_slice %15 {offsets = [12, 0], sizes = [4, 128], strides = [1, 1]} : vector<32x128xf32> to vector<4x128xf32>
    %cst_37 = arith.constant dense<0.000000e+00> : vector<4x128xf32>
    %100 = tpu.matmul %97, %10, %cst_37 {dimension_numbers = #tpu.dot_dimension_numbers<[1], [0], [0], [1], [0, 0, 1, 1], [], []>} : vector<4x32xf32>, vector<32x128xf32>, vector<4x128xf32> -> vector<4x128xf32>
    %101 = arith.addf %99, %100 : vector<4x128xf32>
    %102 = arith.mulf %101, %8 : vector<4x128xf32>
    %103 = math.tanh %102 : vector<4x128xf32>
    %104 = vector.extract_strided_slice %103 {offsets = [0, 0], sizes = [4, 32], strides = [1, 1]} : vector<4x128xf32> to vector<4x32xf32>
    %cst_38 = arith.constant 5.000000e-01 : f32
    %105 = vector.broadcast %cst_38 : f32 to vector<4x32xf32>
    %106 = arith.mulf %105, %104 : vector<4x32xf32>
    %cst_39 = arith.constant 5.000000e-01 : f32
    %107 = vector.broadcast %cst_39 : f32 to vector<4x32xf32>
    %108 = arith.addf %106, %107 : vector<4x32xf32>
    %109 = vector.extract_strided_slice %103 {offsets = [0, 32], sizes = [4, 32], strides = [1, 1]} : vector<4x128xf32> to vector<4x32xf32>
    %cst_40 = arith.constant 5.000000e-01 : f32
    %110 = vector.broadcast %cst_40 : f32 to vector<4x32xf32>
    %111 = arith.mulf %110, %109 : vector<4x32xf32>
    %cst_41 = arith.constant 5.000000e-01 : f32
    %112 = vector.broadcast %cst_41 : f32 to vector<4x32xf32>
    %113 = arith.addf %111, %112 : vector<4x32xf32>
    %114 = vector.extract_strided_slice %103 {offsets = [0, 64], sizes = [4, 32], strides = [1, 1]} : vector<4x128xf32> to vector<4x32xf32>
    %115 = vector.extract_strided_slice %103 {offsets = [0, 96], sizes = [4, 32], strides = [1, 1]} : vector<4x128xf32> to vector<4x32xf32>
    %cst_42 = arith.constant 5.000000e-01 : f32
    %116 = vector.broadcast %cst_42 : f32 to vector<4x32xf32>
    %117 = arith.mulf %116, %115 : vector<4x32xf32>
    %cst_43 = arith.constant 5.000000e-01 : f32
    %118 = vector.broadcast %cst_43 : f32 to vector<4x32xf32>
    %119 = arith.addf %117, %118 : vector<4x32xf32>
    %120 = arith.mulf %113, %95 : vector<4x32xf32>
    %121 = arith.mulf %108, %114 : vector<4x32xf32>
    %122 = arith.addf %120, %121 : vector<4x32xf32>
    %123 = math.tanh %122 : vector<4x32xf32>
    %124 = arith.mulf %119, %123 : vector<4x32xf32>
    %c12 = arith.constant 12 : index
    %c0_44 = arith.constant 0 : index
    %125 = vector.load %arg13[%c12, %c0_44] : memref<32x32xf32, #tpu.memory_space<vmem>>, vector<4x32xf32>
    tpu.vector_store %arg13[%c12, %c0_44], %124 {strides = array<i32>} : memref<32x32xf32, #tpu.memory_space<vmem>>, vector<4x32xf32>,
    %126 = vector.extract_strided_slice %15 {offsets = [16, 0], sizes = [4, 128], strides = [1, 1]} : vector<32x128xf32> to vector<4x128xf32>
    %cst_45 = arith.constant dense<0.000000e+00> : vector<4x128xf32>
    %127 = tpu.matmul %124, %10, %cst_45 {dimension_numbers = #tpu.dot_dimension_numbers<[1], [0], [0], [1], [0, 0, 1, 1], [], []>} : vector<4x32xf32>, vector<32x128xf32>, vector<4x128xf32> -> vector<4x128xf32>
    %128 = arith.addf %126, %127 : vector<4x128xf32>
    %129 = arith.mulf %128, %8 : vector<4x128xf32>
    %130 = math.tanh %129 : vector<4x128xf32>
    %131 = vector.extract_strided_slice %130 {offsets = [0, 0], sizes = [4, 32], strides = [1, 1]} : vector<4x128xf32> to vector<4x32xf32>
    %cst_46 = arith.constant 5.000000e-01 : f32
    %132 = vector.broadcast %cst_46 : f32 to vector<4x32xf32>
    %133 = arith.mulf %132, %131 : vector<4x32xf32>
    %cst_47 = arith.constant 5.000000e-01 : f32
    %134 = vector.broadcast %cst_47 : f32 to vector<4x32xf32>
    %135 = arith.addf %133, %134 : vector<4x32xf32>
    %136 = vector.extract_strided_slice %130 {offsets = [0, 32], sizes = [4, 32], strides = [1, 1]} : vector<4x128xf32> to vector<4x32xf32>
    %cst_48 = arith.constant 5.000000e-01 : f32
    %137 = vector.broadcast %cst_48 : f32 to vector<4x32xf32>
    %138 = arith.mulf %137, %136 : vector<4x32xf32>
    %cst_49 = arith.constant 5.000000e-01 : f32
    %139 = vector.broadcast %cst_49 : f32 to vector<4x32xf32>
    %140 = arith.addf %138, %139 : vector<4x32xf32>
    %141 = vector.extract_strided_slice %130 {offsets = [0, 64], sizes = [4, 32], strides = [1, 1]} : vector<4x128xf32> to vector<4x32xf32>
    %142 = vector.extract_strided_slice %130 {offsets = [0, 96], sizes = [4, 32], strides = [1, 1]} : vector<4x128xf32> to vector<4x32xf32>
    %cst_50 = arith.constant 5.000000e-01 : f32
    %143 = vector.broadcast %cst_50 : f32 to vector<4x32xf32>
    %144 = arith.mulf %143, %142 : vector<4x32xf32>
    %cst_51 = arith.constant 5.000000e-01 : f32
    %145 = vector.broadcast %cst_51 : f32 to vector<4x32xf32>
    %146 = arith.addf %144, %145 : vector<4x32xf32>
    %147 = arith.mulf %140, %122 : vector<4x32xf32>
    %148 = arith.mulf %135, %141 : vector<4x32xf32>
    %149 = arith.addf %147, %148 : vector<4x32xf32>
    %150 = math.tanh %149 : vector<4x32xf32>
    %151 = arith.mulf %146, %150 : vector<4x32xf32>
    %c16 = arith.constant 16 : index
    %c0_52 = arith.constant 0 : index
    %152 = vector.load %arg13[%c16, %c0_52] : memref<32x32xf32, #tpu.memory_space<vmem>>, vector<4x32xf32>
    tpu.vector_store %arg13[%c16, %c0_52], %151 {strides = array<i32>} : memref<32x32xf32, #tpu.memory_space<vmem>>, vector<4x32xf32>,
    %153 = vector.extract_strided_slice %15 {offsets = [20, 0], sizes = [4, 128], strides = [1, 1]} : vector<32x128xf32> to vector<4x128xf32>
    %cst_53 = arith.constant dense<0.000000e+00> : vector<4x128xf32>
    %154 = tpu.matmul %151, %10, %cst_53 {dimension_numbers = #tpu.dot_dimension_numbers<[1], [0], [0], [1], [0, 0, 1, 1], [], []>} : vector<4x32xf32>, vector<32x128xf32>, vector<4x128xf32> -> vector<4x128xf32>
    %155 = arith.addf %153, %154 : vector<4x128xf32>
    %156 = arith.mulf %155, %8 : vector<4x128xf32>
    %157 = math.tanh %156 : vector<4x128xf32>
    %158 = vector.extract_strided_slice %157 {offsets = [0, 0], sizes = [4, 32], strides = [1, 1]} : vector<4x128xf32> to vector<4x32xf32>
    %cst_54 = arith.constant 5.000000e-01 : f32
    %159 = vector.broadcast %cst_54 : f32 to vector<4x32xf32>
    %160 = arith.mulf %159, %158 : vector<4x32xf32>
    %cst_55 = arith.constant 5.000000e-01 : f32
    %161 = vector.broadcast %cst_55 : f32 to vector<4x32xf32>
    %162 = arith.addf %160, %161 : vector<4x32xf32>
    %163 = vector.extract_strided_slice %157 {offsets = [0, 32], sizes = [4, 32], strides = [1, 1]} : vector<4x128xf32> to vector<4x32xf32>
    %cst_56 = arith.constant 5.000000e-01 : f32
    %164 = vector.broadcast %cst_56 : f32 to vector<4x32xf32>
    %165 = arith.mulf %164, %163 : vector<4x32xf32>
    %cst_57 = arith.constant 5.000000e-01 : f32
    %166 = vector.broadcast %cst_57 : f32 to vector<4x32xf32>
    %167 = arith.addf %165, %166 : vector<4x32xf32>
    %168 = vector.extract_strided_slice %157 {offsets = [0, 64], sizes = [4, 32], strides = [1, 1]} : vector<4x128xf32> to vector<4x32xf32>
    %169 = vector.extract_strided_slice %157 {offsets = [0, 96], sizes = [4, 32], strides = [1, 1]} : vector<4x128xf32> to vector<4x32xf32>
    %cst_58 = arith.constant 5.000000e-01 : f32
    %170 = vector.broadcast %cst_58 : f32 to vector<4x32xf32>
    %171 = arith.mulf %170, %169 : vector<4x32xf32>
    %cst_59 = arith.constant 5.000000e-01 : f32
    %172 = vector.broadcast %cst_59 : f32 to vector<4x32xf32>
    %173 = arith.addf %171, %172 : vector<4x32xf32>
    %174 = arith.mulf %167, %149 : vector<4x32xf32>
    %175 = arith.mulf %162, %168 : vector<4x32xf32>
    %176 = arith.addf %174, %175 : vector<4x32xf32>
    %177 = math.tanh %176 : vector<4x32xf32>
    %178 = arith.mulf %173, %177 : vector<4x32xf32>
    %c20 = arith.constant 20 : index
    %c0_60 = arith.constant 0 : index
    %179 = vector.load %arg13[%c20, %c0_60] : memref<32x32xf32, #tpu.memory_space<vmem>>, vector<4x32xf32>
    tpu.vector_store %arg13[%c20, %c0_60], %178 {strides = array<i32>} : memref<32x32xf32, #tpu.memory_space<vmem>>, vector<4x32xf32>,
    %180 = vector.extract_strided_slice %15 {offsets = [24, 0], sizes = [4, 128], strides = [1, 1]} : vector<32x128xf32> to vector<4x128xf32>
    %cst_61 = arith.constant dense<0.000000e+00> : vector<4x128xf32>
    %181 = tpu.matmul %178, %10, %cst_61 {dimension_numbers = #tpu.dot_dimension_numbers<[1], [0], [0], [1], [0, 0, 1, 1], [], []>} : vector<4x32xf32>, vector<32x128xf32>, vector<4x128xf32> -> vector<4x128xf32>
    %182 = arith.addf %180, %181 : vector<4x128xf32>
    %183 = arith.mulf %182, %8 : vector<4x128xf32>
    %184 = math.tanh %183 : vector<4x128xf32>
    %185 = vector.extract_strided_slice %184 {offsets = [0, 0], sizes = [4, 32], strides = [1, 1]} : vector<4x128xf32> to vector<4x32xf32>
    %cst_62 = arith.constant 5.000000e-01 : f32
    %186 = vector.broadcast %cst_62 : f32 to vector<4x32xf32>
    %187 = arith.mulf %186, %185 : vector<4x32xf32>
    %cst_63 = arith.constant 5.000000e-01 : f32
    %188 = vector.broadcast %cst_63 : f32 to vector<4x32xf32>
    %189 = arith.addf %187, %188 : vector<4x32xf32>
    %190 = vector.extract_strided_slice %184 {offsets = [0, 32], sizes = [4, 32], strides = [1, 1]} : vector<4x128xf32> to vector<4x32xf32>
    %cst_64 = arith.constant 5.000000e-01 : f32
    %191 = vector.broadcast %cst_64 : f32 to vector<4x32xf32>
    %192 = arith.mulf %191, %190 : vector<4x32xf32>
    %cst_65 = arith.constant 5.000000e-01 : f32
    %193 = vector.broadcast %cst_65 : f32 to vector<4x32xf32>
    %194 = arith.addf %192, %193 : vector<4x32xf32>
    %195 = vector.extract_strided_slice %184 {offsets = [0, 64], sizes = [4, 32], strides = [1, 1]} : vector<4x128xf32> to vector<4x32xf32>
    %196 = vector.extract_strided_slice %184 {offsets = [0, 96], sizes = [4, 32], strides = [1, 1]} : vector<4x128xf32> to vector<4x32xf32>
    %cst_66 = arith.constant 5.000000e-01 : f32
    %197 = vector.broadcast %cst_66 : f32 to vector<4x32xf32>
    %198 = arith.mulf %197, %196 : vector<4x32xf32>
    %cst_67 = arith.constant 5.000000e-01 : f32
    %199 = vector.broadcast %cst_67 : f32 to vector<4x32xf32>
    %200 = arith.addf %198, %199 : vector<4x32xf32>
    %201 = arith.mulf %194, %176 : vector<4x32xf32>
    %202 = arith.mulf %189, %195 : vector<4x32xf32>
    %203 = arith.addf %201, %202 : vector<4x32xf32>
    %204 = math.tanh %203 : vector<4x32xf32>
    %205 = arith.mulf %200, %204 : vector<4x32xf32>
    %c24 = arith.constant 24 : index
    %c0_68 = arith.constant 0 : index
    %206 = vector.load %arg13[%c24, %c0_68] : memref<32x32xf32, #tpu.memory_space<vmem>>, vector<4x32xf32>
    tpu.vector_store %arg13[%c24, %c0_68], %205 {strides = array<i32>} : memref<32x32xf32, #tpu.memory_space<vmem>>, vector<4x32xf32>,
    %207 = vector.extract_strided_slice %15 {offsets = [28, 0], sizes = [4, 128], strides = [1, 1]} : vector<32x128xf32> to vector<4x128xf32>
    %cst_69 = arith.constant dense<0.000000e+00> : vector<4x128xf32>
    %208 = tpu.matmul %205, %10, %cst_69 {dimension_numbers = #tpu.dot_dimension_numbers<[1], [0], [0], [1], [0, 0, 1, 1], [], []>} : vector<4x32xf32>, vector<32x128xf32>, vector<4x128xf32> -> vector<4x128xf32>
    %209 = arith.addf %207, %208 : vector<4x128xf32>
    %210 = arith.mulf %209, %8 : vector<4x128xf32>
    %211 = math.tanh %210 : vector<4x128xf32>
    %212 = vector.extract_strided_slice %211 {offsets = [0, 0], sizes = [4, 32], strides = [1, 1]} : vector<4x128xf32> to vector<4x32xf32>
    %cst_70 = arith.constant 5.000000e-01 : f32
    %213 = vector.broadcast %cst_70 : f32 to vector<4x32xf32>
    %214 = arith.mulf %213, %212 : vector<4x32xf32>
    %cst_71 = arith.constant 5.000000e-01 : f32
    %215 = vector.broadcast %cst_71 : f32 to vector<4x32xf32>
    %216 = arith.addf %214, %215 : vector<4x32xf32>
    %217 = vector.extract_strided_slice %211 {offsets = [0, 32], sizes = [4, 32], strides = [1, 1]} : vector<4x128xf32> to vector<4x32xf32>
    %cst_72 = arith.constant 5.000000e-01 : f32
    %218 = vector.broadcast %cst_72 : f32 to vector<4x32xf32>
    %219 = arith.mulf %218, %217 : vector<4x32xf32>
    %cst_73 = arith.constant 5.000000e-01 : f32
    %220 = vector.broadcast %cst_73 : f32 to vector<4x32xf32>
    %221 = arith.addf %219, %220 : vector<4x32xf32>
    %222 = vector.extract_strided_slice %211 {offsets = [0, 64], sizes = [4, 32], strides = [1, 1]} : vector<4x128xf32> to vector<4x32xf32>
    %223 = vector.extract_strided_slice %211 {offsets = [0, 96], sizes = [4, 32], strides = [1, 1]} : vector<4x128xf32> to vector<4x32xf32>
    %cst_74 = arith.constant 5.000000e-01 : f32
    %224 = vector.broadcast %cst_74 : f32 to vector<4x32xf32>
    %225 = arith.mulf %224, %223 : vector<4x32xf32>
    %cst_75 = arith.constant 5.000000e-01 : f32
    %226 = vector.broadcast %cst_75 : f32 to vector<4x32xf32>
    %227 = arith.addf %225, %226 : vector<4x32xf32>
    %228 = arith.mulf %221, %203 : vector<4x32xf32>
    %229 = arith.mulf %216, %222 : vector<4x32xf32>
    %230 = arith.addf %228, %229 : vector<4x32xf32>
    %231 = math.tanh %230 : vector<4x32xf32>
    %232 = arith.mulf %227, %231 : vector<4x32xf32>
    %c28 = arith.constant 28 : index
    %c0_76 = arith.constant 0 : index
    %233 = vector.load %arg13[%c28, %c0_76] : memref<32x32xf32, #tpu.memory_space<vmem>>, vector<4x32xf32>
    tpu.vector_store %arg13[%c28, %c0_76], %232 {strides = array<i32>} : memref<32x32xf32, #tpu.memory_space<vmem>>, vector<4x32xf32>,
    %c0_77 = arith.constant 0 : index
    %c0_78 = arith.constant 0 : index
    %234 = vector.load %arg4[%c0_77, %c0_78] : memref<32x128xf32, #tpu.memory_space<vmem>>, vector<32x128xf32>
    %c0_79 = arith.constant 0 : index
    %c0_80 = arith.constant 0 : index
    %235 = vector.load %arg5[%c0_79, %c0_80] : memref<32x128xf32, #tpu.memory_space<vmem>>, vector<32x128xf32>
    %c0_81 = arith.constant 0 : index
    %c0_82 = arith.constant 0 : index
    %236 = vector.load %arg6[%c0_81, %c0_82] : memref<1x128xf32, #tpu.memory_space<vmem>>, vector<1x128xf32>
    %c0_83 = arith.constant 0 : index
    %c0_84 = arith.constant 0 : index
    %237 = vector.load %arg13[%c0_83, %c0_84] : memref<32x32xf32, #tpu.memory_space<vmem>>, vector<32x32xf32>
    %cst_85 = arith.constant dense<0.000000e+00> : vector<32x128xf32>
    %238 = tpu.matmul %237, %234, %cst_85 {dimension_numbers = #tpu.dot_dimension_numbers<[1], [0], [0], [1], [0, 0, 1, 1], [], []>} : vector<32x32xf32>, vector<32x128xf32>, vector<32x128xf32> -> vector<32x128xf32>
    %239 = vector.broadcast %236 : vector<1x128xf32> to vector<32x128xf32>
    %240 = arith.addf %238, %239 : vector<32x128xf32>
    %c1 = arith.constant 1 : index
    %c0_86 = arith.constant 0 : index
    %c0_87 = arith.constant 0 : index
    %241 = vector.load %arg7[%c1, %c0_86, %c0_87] : memref<2x4x32xf32, #tpu.memory_space<vmem>>, vector<1x4x32xf32>
    %242 = vector.shape_cast %241 : vector<1x4x32xf32> to vector<4x32xf32>
    %243 = vector.extract_strided_slice %240 {offsets = [0, 0], sizes = [4, 128], strides = [1, 1]} : vector<32x128xf32> to vector<4x128xf32>
    %cst_88 = arith.constant dense<0.000000e+00> : vector<4x128xf32>
    %244 = tpu.matmul %242, %235, %cst_88 {dimension_numbers = #tpu.dot_dimension_numbers<[1], [0], [0], [1], [0, 0, 1, 1], [], []>} : vector<4x32xf32>, vector<32x128xf32>, vector<4x128xf32> -> vector<4x128xf32>
    %245 = arith.addf %243, %244 : vector<4x128xf32>
    %246 = arith.mulf %245, %8 : vector<4x128xf32>
    %247 = math.tanh %246 : vector<4x128xf32>
    %248 = vector.extract_strided_slice %247 {offsets = [0, 0], sizes = [4, 32], strides = [1, 1]} : vector<4x128xf32> to vector<4x32xf32>
    %cst_89 = arith.constant 5.000000e-01 : f32
    %249 = vector.broadcast %cst_89 : f32 to vector<4x32xf32>
    %250 = arith.mulf %249, %248 : vector<4x32xf32>
    %cst_90 = arith.constant 5.000000e-01 : f32
    %251 = vector.broadcast %cst_90 : f32 to vector<4x32xf32>
    %252 = arith.addf %250, %251 : vector<4x32xf32>
    %253 = vector.extract_strided_slice %247 {offsets = [0, 32], sizes = [4, 32], strides = [1, 1]} : vector<4x128xf32> to vector<4x32xf32>
    %cst_91 = arith.constant 5.000000e-01 : f32
    %254 = vector.broadcast %cst_91 : f32 to vector<4x32xf32>
    %255 = arith.mulf %254, %253 : vector<4x32xf32>
    %cst_92 = arith.constant 5.000000e-01 : f32
    %256 = vector.broadcast %cst_92 : f32 to vector<4x32xf32>
    %257 = arith.addf %255, %256 : vector<4x32xf32>
    %258 = vector.extract_strided_slice %247 {offsets = [0, 64], sizes = [4, 32], strides = [1, 1]} : vector<4x128xf32> to vector<4x32xf32>
    %259 = vector.extract_strided_slice %247 {offsets = [0, 96], sizes = [4, 32], strides = [1, 1]} : vector<4x128xf32> to vector<4x32xf32>
    %cst_93 = arith.constant 5.000000e-01 : f32
    %260 = vector.broadcast %cst_93 : f32 to vector<4x32xf32>
    %261 = arith.mulf %260, %259 : vector<4x32xf32>
    %cst_94 = arith.constant 5.000000e-01 : f32
    %262 = vector.broadcast %cst_94 : f32 to vector<4x32xf32>
    %263 = arith.addf %261, %262 : vector<4x32xf32>
    %264 = arith.mulf %257, %242 : vector<4x32xf32>
    %265 = arith.mulf %252, %258 : vector<4x32xf32>
    %266 = arith.addf %264, %265 : vector<4x32xf32>
    %267 = math.tanh %266 : vector<4x32xf32>
    %268 = arith.mulf %263, %267 : vector<4x32xf32>
    %269 = vector.extract_strided_slice %240 {offsets = [4, 0], sizes = [4, 128], strides = [1, 1]} : vector<32x128xf32> to vector<4x128xf32>
    %cst_95 = arith.constant dense<0.000000e+00> : vector<4x128xf32>
    %270 = tpu.matmul %268, %235, %cst_95 {dimension_numbers = #tpu.dot_dimension_numbers<[1], [0], [0], [1], [0, 0, 1, 1], [], []>} : vector<4x32xf32>, vector<32x128xf32>, vector<4x128xf32> -> vector<4x128xf32>
    %271 = arith.addf %269, %270 : vector<4x128xf32>
    %272 = arith.mulf %271, %8 : vector<4x128xf32>
    %273 = math.tanh %272 : vector<4x128xf32>
    %274 = vector.extract_strided_slice %273 {offsets = [0, 0], sizes = [4, 32], strides = [1, 1]} : vector<4x128xf32> to vector<4x32xf32>
    %cst_96 = arith.constant 5.000000e-01 : f32
    %275 = vector.broadcast %cst_96 : f32 to vector<4x32xf32>
    %276 = arith.mulf %275, %274 : vector<4x32xf32>
    %cst_97 = arith.constant 5.000000e-01 : f32
    %277 = vector.broadcast %cst_97 : f32 to vector<4x32xf32>
    %278 = arith.addf %276, %277 : vector<4x32xf32>
    %279 = vector.extract_strided_slice %273 {offsets = [0, 32], sizes = [4, 32], strides = [1, 1]} : vector<4x128xf32> to vector<4x32xf32>
    %cst_98 = arith.constant 5.000000e-01 : f32
    %280 = vector.broadcast %cst_98 : f32 to vector<4x32xf32>
    %281 = arith.mulf %280, %279 : vector<4x32xf32>
    %cst_99 = arith.constant 5.000000e-01 : f32
    %282 = vector.broadcast %cst_99 : f32 to vector<4x32xf32>
    %283 = arith.addf %281, %282 : vector<4x32xf32>
    %284 = vector.extract_strided_slice %273 {offsets = [0, 64], sizes = [4, 32], strides = [1, 1]} : vector<4x128xf32> to vector<4x32xf32>
    %285 = vector.extract_strided_slice %273 {offsets = [0, 96], sizes = [4, 32], strides = [1, 1]} : vector<4x128xf32> to vector<4x32xf32>
    %cst_100 = arith.constant 5.000000e-01 : f32
    %286 = vector.broadcast %cst_100 : f32 to vector<4x32xf32>
    %287 = arith.mulf %286, %285 : vector<4x32xf32>
    %cst_101 = arith.constant 5.000000e-01 : f32
    %288 = vector.broadcast %cst_101 : f32 to vector<4x32xf32>
    %289 = arith.addf %287, %288 : vector<4x32xf32>
    %290 = arith.mulf %283, %266 : vector<4x32xf32>
    %291 = arith.mulf %278, %284 : vector<4x32xf32>
    %292 = arith.addf %290, %291 : vector<4x32xf32>
    %293 = math.tanh %292 : vector<4x32xf32>
    %294 = arith.mulf %289, %293 : vector<4x32xf32>
    %295 = vector.extract_strided_slice %240 {offsets = [8, 0], sizes = [4, 128], strides = [1, 1]} : vector<32x128xf32> to vector<4x128xf32>
    %cst_102 = arith.constant dense<0.000000e+00> : vector<4x128xf32>
    %296 = tpu.matmul %294, %235, %cst_102 {dimension_numbers = #tpu.dot_dimension_numbers<[1], [0], [0], [1], [0, 0, 1, 1], [], []>} : vector<4x32xf32>, vector<32x128xf32>, vector<4x128xf32> -> vector<4x128xf32>
    %297 = arith.addf %295, %296 : vector<4x128xf32>
    %298 = arith.mulf %297, %8 : vector<4x128xf32>
    %299 = math.tanh %298 : vector<4x128xf32>
    %300 = vector.extract_strided_slice %299 {offsets = [0, 0], sizes = [4, 32], strides = [1, 1]} : vector<4x128xf32> to vector<4x32xf32>
    %cst_103 = arith.constant 5.000000e-01 : f32
    %301 = vector.broadcast %cst_103 : f32 to vector<4x32xf32>
    %302 = arith.mulf %301, %300 : vector<4x32xf32>
    %cst_104 = arith.constant 5.000000e-01 : f32
    %303 = vector.broadcast %cst_104 : f32 to vector<4x32xf32>
    %304 = arith.addf %302, %303 : vector<4x32xf32>
    %305 = vector.extract_strided_slice %299 {offsets = [0, 32], sizes = [4, 32], strides = [1, 1]} : vector<4x128xf32> to vector<4x32xf32>
    %cst_105 = arith.constant 5.000000e-01 : f32
    %306 = vector.broadcast %cst_105 : f32 to vector<4x32xf32>
    %307 = arith.mulf %306, %305 : vector<4x32xf32>
    %cst_106 = arith.constant 5.000000e-01 : f32
    %308 = vector.broadcast %cst_106 : f32 to vector<4x32xf32>
    %309 = arith.addf %307, %308 : vector<4x32xf32>
    %310 = vector.extract_strided_slice %299 {offsets = [0, 64], sizes = [4, 32], strides = [1, 1]} : vector<4x128xf32> to vector<4x32xf32>
    %311 = vector.extract_strided_slice %299 {offsets = [0, 96], sizes = [4, 32], strides = [1, 1]} : vector<4x128xf32> to vector<4x32xf32>
    %cst_107 = arith.constant 5.000000e-01 : f32
    %312 = vector.broadcast %cst_107 : f32 to vector<4x32xf32>
    %313 = arith.mulf %312, %311 : vector<4x32xf32>
    %cst_108 = arith.constant 5.000000e-01 : f32
    %314 = vector.broadcast %cst_108 : f32 to vector<4x32xf32>
    %315 = arith.addf %313, %314 : vector<4x32xf32>
    %316 = arith.mulf %309, %292 : vector<4x32xf32>
    %317 = arith.mulf %304, %310 : vector<4x32xf32>
    %318 = arith.addf %316, %317 : vector<4x32xf32>
    %319 = math.tanh %318 : vector<4x32xf32>
    %320 = arith.mulf %315, %319 : vector<4x32xf32>
    %321 = vector.extract_strided_slice %240 {offsets = [12, 0], sizes = [4, 128], strides = [1, 1]} : vector<32x128xf32> to vector<4x128xf32>
    %cst_109 = arith.constant dense<0.000000e+00> : vector<4x128xf32>
    %322 = tpu.matmul %320, %235, %cst_109 {dimension_numbers = #tpu.dot_dimension_numbers<[1], [0], [0], [1], [0, 0, 1, 1], [], []>} : vector<4x32xf32>, vector<32x128xf32>, vector<4x128xf32> -> vector<4x128xf32>
    %323 = arith.addf %321, %322 : vector<4x128xf32>
    %324 = arith.mulf %323, %8 : vector<4x128xf32>
    %325 = math.tanh %324 : vector<4x128xf32>
    %326 = vector.extract_strided_slice %325 {offsets = [0, 0], sizes = [4, 32], strides = [1, 1]} : vector<4x128xf32> to vector<4x32xf32>
    %cst_110 = arith.constant 5.000000e-01 : f32
    %327 = vector.broadcast %cst_110 : f32 to vector<4x32xf32>
    %328 = arith.mulf %327, %326 : vector<4x32xf32>
    %cst_111 = arith.constant 5.000000e-01 : f32
    %329 = vector.broadcast %cst_111 : f32 to vector<4x32xf32>
    %330 = arith.addf %328, %329 : vector<4x32xf32>
    %331 = vector.extract_strided_slice %325 {offsets = [0, 32], sizes = [4, 32], strides = [1, 1]} : vector<4x128xf32> to vector<4x32xf32>
    %cst_112 = arith.constant 5.000000e-01 : f32
    %332 = vector.broadcast %cst_112 : f32 to vector<4x32xf32>
    %333 = arith.mulf %332, %331 : vector<4x32xf32>
    %cst_113 = arith.constant 5.000000e-01 : f32
    %334 = vector.broadcast %cst_113 : f32 to vector<4x32xf32>
    %335 = arith.addf %333, %334 : vector<4x32xf32>
    %336 = vector.extract_strided_slice %325 {offsets = [0, 64], sizes = [4, 32], strides = [1, 1]} : vector<4x128xf32> to vector<4x32xf32>
    %337 = vector.extract_strided_slice %325 {offsets = [0, 96], sizes = [4, 32], strides = [1, 1]} : vector<4x128xf32> to vector<4x32xf32>
    %cst_114 = arith.constant 5.000000e-01 : f32
    %338 = vector.broadcast %cst_114 : f32 to vector<4x32xf32>
    %339 = arith.mulf %338, %337 : vector<4x32xf32>
    %cst_115 = arith.constant 5.000000e-01 : f32
    %340 = vector.broadcast %cst_115 : f32 to vector<4x32xf32>
    %341 = arith.addf %339, %340 : vector<4x32xf32>
    %342 = arith.mulf %335, %318 : vector<4x32xf32>
    %343 = arith.mulf %330, %336 : vector<4x32xf32>
    %344 = arith.addf %342, %343 : vector<4x32xf32>
    %345 = math.tanh %344 : vector<4x32xf32>
    %346 = arith.mulf %341, %345 : vector<4x32xf32>
    %347 = vector.extract_strided_slice %240 {offsets = [16, 0], sizes = [4, 128], strides = [1, 1]} : vector<32x128xf32> to vector<4x128xf32>
    %cst_116 = arith.constant dense<0.000000e+00> : vector<4x128xf32>
    %348 = tpu.matmul %346, %235, %cst_116 {dimension_numbers = #tpu.dot_dimension_numbers<[1], [0], [0], [1], [0, 0, 1, 1], [], []>} : vector<4x32xf32>, vector<32x128xf32>, vector<4x128xf32> -> vector<4x128xf32>
    %349 = arith.addf %347, %348 : vector<4x128xf32>
    %350 = arith.mulf %349, %8 : vector<4x128xf32>
    %351 = math.tanh %350 : vector<4x128xf32>
    %352 = vector.extract_strided_slice %351 {offsets = [0, 0], sizes = [4, 32], strides = [1, 1]} : vector<4x128xf32> to vector<4x32xf32>
    %cst_117 = arith.constant 5.000000e-01 : f32
    %353 = vector.broadcast %cst_117 : f32 to vector<4x32xf32>
    %354 = arith.mulf %353, %352 : vector<4x32xf32>
    %cst_118 = arith.constant 5.000000e-01 : f32
    %355 = vector.broadcast %cst_118 : f32 to vector<4x32xf32>
    %356 = arith.addf %354, %355 : vector<4x32xf32>
    %357 = vector.extract_strided_slice %351 {offsets = [0, 32], sizes = [4, 32], strides = [1, 1]} : vector<4x128xf32> to vector<4x32xf32>
    %cst_119 = arith.constant 5.000000e-01 : f32
    %358 = vector.broadcast %cst_119 : f32 to vector<4x32xf32>
    %359 = arith.mulf %358, %357 : vector<4x32xf32>
    %cst_120 = arith.constant 5.000000e-01 : f32
    %360 = vector.broadcast %cst_120 : f32 to vector<4x32xf32>
    %361 = arith.addf %359, %360 : vector<4x32xf32>
    %362 = vector.extract_strided_slice %351 {offsets = [0, 64], sizes = [4, 32], strides = [1, 1]} : vector<4x128xf32> to vector<4x32xf32>
    %363 = vector.extract_strided_slice %351 {offsets = [0, 96], sizes = [4, 32], strides = [1, 1]} : vector<4x128xf32> to vector<4x32xf32>
    %cst_121 = arith.constant 5.000000e-01 : f32
    %364 = vector.broadcast %cst_121 : f32 to vector<4x32xf32>
    %365 = arith.mulf %364, %363 : vector<4x32xf32>
    %cst_122 = arith.constant 5.000000e-01 : f32
    %366 = vector.broadcast %cst_122 : f32 to vector<4x32xf32>
    %367 = arith.addf %365, %366 : vector<4x32xf32>
    %368 = arith.mulf %361, %344 : vector<4x32xf32>
    %369 = arith.mulf %356, %362 : vector<4x32xf32>
    %370 = arith.addf %368, %369 : vector<4x32xf32>
    %371 = math.tanh %370 : vector<4x32xf32>
    %372 = arith.mulf %367, %371 : vector<4x32xf32>
    %373 = vector.extract_strided_slice %240 {offsets = [20, 0], sizes = [4, 128], strides = [1, 1]} : vector<32x128xf32> to vector<4x128xf32>
    %cst_123 = arith.constant dense<0.000000e+00> : vector<4x128xf32>
    %374 = tpu.matmul %372, %235, %cst_123 {dimension_numbers = #tpu.dot_dimension_numbers<[1], [0], [0], [1], [0, 0, 1, 1], [], []>} : vector<4x32xf32>, vector<32x128xf32>, vector<4x128xf32> -> vector<4x128xf32>
    %375 = arith.addf %373, %374 : vector<4x128xf32>
    %376 = arith.mulf %375, %8 : vector<4x128xf32>
    %377 = math.tanh %376 : vector<4x128xf32>
    %378 = vector.extract_strided_slice %377 {offsets = [0, 0], sizes = [4, 32], strides = [1, 1]} : vector<4x128xf32> to vector<4x32xf32>
    %cst_124 = arith.constant 5.000000e-01 : f32
    %379 = vector.broadcast %cst_124 : f32 to vector<4x32xf32>
    %380 = arith.mulf %379, %378 : vector<4x32xf32>
    %cst_125 = arith.constant 5.000000e-01 : f32
    %381 = vector.broadcast %cst_125 : f32 to vector<4x32xf32>
    %382 = arith.addf %380, %381 : vector<4x32xf32>
    %383 = vector.extract_strided_slice %377 {offsets = [0, 32], sizes = [4, 32], strides = [1, 1]} : vector<4x128xf32> to vector<4x32xf32>
    %cst_126 = arith.constant 5.000000e-01 : f32
    %384 = vector.broadcast %cst_126 : f32 to vector<4x32xf32>
    %385 = arith.mulf %384, %383 : vector<4x32xf32>
    %cst_127 = arith.constant 5.000000e-01 : f32
    %386 = vector.broadcast %cst_127 : f32 to vector<4x32xf32>
    %387 = arith.addf %385, %386 : vector<4x32xf32>
    %388 = vector.extract_strided_slice %377 {offsets = [0, 64], sizes = [4, 32], strides = [1, 1]} : vector<4x128xf32> to vector<4x32xf32>
    %389 = vector.extract_strided_slice %377 {offsets = [0, 96], sizes = [4, 32], strides = [1, 1]} : vector<4x128xf32> to vector<4x32xf32>
    %cst_128 = arith.constant 5.000000e-01 : f32
    %390 = vector.broadcast %cst_128 : f32 to vector<4x32xf32>
    %391 = arith.mulf %390, %389 : vector<4x32xf32>
    %cst_129 = arith.constant 5.000000e-01 : f32
    %392 = vector.broadcast %cst_129 : f32 to vector<4x32xf32>
    %393 = arith.addf %391, %392 : vector<4x32xf32>
    %394 = arith.mulf %387, %370 : vector<4x32xf32>
    %395 = arith.mulf %382, %388 : vector<4x32xf32>
    %396 = arith.addf %394, %395 : vector<4x32xf32>
    %397 = math.tanh %396 : vector<4x32xf32>
    %398 = arith.mulf %393, %397 : vector<4x32xf32>
    %399 = vector.extract_strided_slice %240 {offsets = [24, 0], sizes = [4, 128], strides = [1, 1]} : vector<32x128xf32> to vector<4x128xf32>
    %cst_130 = arith.constant dense<0.000000e+00> : vector<4x128xf32>
    %400 = tpu.matmul %398, %235, %cst_130 {dimension_numbers = #tpu.dot_dimension_numbers<[1], [0], [0], [1], [0, 0, 1, 1], [], []>} : vector<4x32xf32>, vector<32x128xf32>, vector<4x128xf32> -> vector<4x128xf32>
    %401 = arith.addf %399, %400 : vector<4x128xf32>
    %402 = arith.mulf %401, %8 : vector<4x128xf32>
    %403 = math.tanh %402 : vector<4x128xf32>
    %404 = vector.extract_strided_slice %403 {offsets = [0, 0], sizes = [4, 32], strides = [1, 1]} : vector<4x128xf32> to vector<4x32xf32>
    %cst_131 = arith.constant 5.000000e-01 : f32
    %405 = vector.broadcast %cst_131 : f32 to vector<4x32xf32>
    %406 = arith.mulf %405, %404 : vector<4x32xf32>
    %cst_132 = arith.constant 5.000000e-01 : f32
    %407 = vector.broadcast %cst_132 : f32 to vector<4x32xf32>
    %408 = arith.addf %406, %407 : vector<4x32xf32>
    %409 = vector.extract_strided_slice %403 {offsets = [0, 32], sizes = [4, 32], strides = [1, 1]} : vector<4x128xf32> to vector<4x32xf32>
    %cst_133 = arith.constant 5.000000e-01 : f32
    %410 = vector.broadcast %cst_133 : f32 to vector<4x32xf32>
    %411 = arith.mulf %410, %409 : vector<4x32xf32>
    %cst_134 = arith.constant 5.000000e-01 : f32
    %412 = vector.broadcast %cst_134 : f32 to vector<4x32xf32>
    %413 = arith.addf %411, %412 : vector<4x32xf32>
    %414 = vector.extract_strided_slice %403 {offsets = [0, 64], sizes = [4, 32], strides = [1, 1]} : vector<4x128xf32> to vector<4x32xf32>
    %415 = vector.extract_strided_slice %403 {offsets = [0, 96], sizes = [4, 32], strides = [1, 1]} : vector<4x128xf32> to vector<4x32xf32>
    %cst_135 = arith.constant 5.000000e-01 : f32
    %416 = vector.broadcast %cst_135 : f32 to vector<4x32xf32>
    %417 = arith.mulf %416, %415 : vector<4x32xf32>
    %cst_136 = arith.constant 5.000000e-01 : f32
    %418 = vector.broadcast %cst_136 : f32 to vector<4x32xf32>
    %419 = arith.addf %417, %418 : vector<4x32xf32>
    %420 = arith.mulf %413, %396 : vector<4x32xf32>
    %421 = arith.mulf %408, %414 : vector<4x32xf32>
    %422 = arith.addf %420, %421 : vector<4x32xf32>
    %423 = math.tanh %422 : vector<4x32xf32>
    %424 = arith.mulf %419, %423 : vector<4x32xf32>
    %425 = vector.extract_strided_slice %240 {offsets = [28, 0], sizes = [4, 128], strides = [1, 1]} : vector<32x128xf32> to vector<4x128xf32>
    %cst_137 = arith.constant dense<0.000000e+00> : vector<4x128xf32>
    %426 = tpu.matmul %424, %235, %cst_137 {dimension_numbers = #tpu.dot_dimension_numbers<[1], [0], [0], [1], [0, 0, 1, 1], [], []>} : vector<4x32xf32>, vector<32x128xf32>, vector<4x128xf32> -> vector<4x128xf32>
    %427 = arith.addf %425, %426 : vector<4x128xf32>
    %428 = arith.mulf %427, %8 : vector<4x128xf32>
    %429 = math.tanh %428 : vector<4x128xf32>
    %430 = vector.extract_strided_slice %429 {offsets = [0, 0], sizes = [4, 32], strides = [1, 1]} : vector<4x128xf32> to vector<4x32xf32>
    %cst_138 = arith.constant 5.000000e-01 : f32
    %431 = vector.broadcast %cst_138 : f32 to vector<4x32xf32>
    %432 = arith.mulf %431, %430 : vector<4x32xf32>
    %cst_139 = arith.constant 5.000000e-01 : f32
    %433 = vector.broadcast %cst_139 : f32 to vector<4x32xf32>
    %434 = arith.addf %432, %433 : vector<4x32xf32>
    %435 = vector.extract_strided_slice %429 {offsets = [0, 32], sizes = [4, 32], strides = [1, 1]} : vector<4x128xf32> to vector<4x32xf32>
    %cst_140 = arith.constant 5.000000e-01 : f32
    %436 = vector.broadcast %cst_140 : f32 to vector<4x32xf32>
    %437 = arith.mulf %436, %435 : vector<4x32xf32>
    %cst_141 = arith.constant 5.000000e-01 : f32
    %438 = vector.broadcast %cst_141 : f32 to vector<4x32xf32>
    %439 = arith.addf %437, %438 : vector<4x32xf32>
    %440 = vector.extract_strided_slice %429 {offsets = [0, 64], sizes = [4, 32], strides = [1, 1]} : vector<4x128xf32> to vector<4x32xf32>
    %441 = vector.extract_strided_slice %429 {offsets = [0, 96], sizes = [4, 32], strides = [1, 1]} : vector<4x128xf32> to vector<4x32xf32>
    %cst_142 = arith.constant 5.000000e-01 : f32
    %442 = vector.broadcast %cst_142 : f32 to vector<4x32xf32>
    %443 = arith.mulf %442, %441 : vector<4x32xf32>
    %cst_143 = arith.constant 5.000000e-01 : f32
    %444 = vector.broadcast %cst_143 : f32 to vector<4x32xf32>
    %445 = arith.addf %443, %444 : vector<4x32xf32>
    %446 = arith.mulf %439, %422 : vector<4x32xf32>
    %447 = arith.mulf %434, %440 : vector<4x32xf32>
    %448 = arith.addf %446, %447 : vector<4x32xf32>
    %449 = math.tanh %448 : vector<4x32xf32>
    %450 = arith.mulf %445, %449 : vector<4x32xf32>
    %cst_144 = arith.constant dense<0.000000e+00> : vector<32xf32>
    %451 = vector.multi_reduction <add>, %450, %cst_144 [0] : vector<4x32xf32> to vector<32xf32>
    %452 = vector.shape_cast %451 : vector<32xf32> to vector<1x32xf32>
    %cst_145 = arith.constant 4.000000e+00 : f32
    %453 = vector.broadcast %cst_145 : f32 to vector<1x32xf32>
    %454 = arith.divf %452, %453 : vector<1x32xf32>
    %455 = vector.broadcast %454 : vector<1x32xf32> to vector<4x32xf32>
    %456 = arith.subf %450, %455 : vector<4x32xf32>
    %457 = arith.mulf %456, %456 : vector<4x32xf32>
    %cst_146 = arith.constant dense<0.000000e+00> : vector<32xf32>
    %458 = vector.multi_reduction <add>, %457, %cst_146 [0] : vector<4x32xf32> to vector<32xf32>
    %459 = vector.shape_cast %458 : vector<32xf32> to vector<1x32xf32>
    %cst_147 = arith.constant 4.000000e+00 : f32
    %460 = vector.broadcast %cst_147 : f32 to vector<1x32xf32>
    %461 = arith.divf %459, %460 : vector<1x32xf32>
    %462 = vector.broadcast %454 : vector<1x32xf32> to vector<4x32xf32>
    %463 = arith.subf %450, %462 : vector<4x32xf32>
    %cst_148 = arith.constant 9.99999974E-6 : f32
    %464 = vector.broadcast %cst_148 : f32 to vector<1x32xf32>
    %465 = arith.addf %461, %464 : vector<1x32xf32>
    %466 = math.rsqrt %465 : vector<1x32xf32>
    %467 = vector.broadcast %466 : vector<1x32xf32> to vector<4x32xf32>
    %468 = arith.mulf %463, %467 : vector<4x32xf32>
    %c0_149 = arith.constant 0 : index
    %c0_150 = arith.constant 0 : index
    %469 = vector.load %arg8[%c0_149, %c0_150] : memref<1x32xf32, #tpu.memory_space<vmem>>, vector<1x32xf32>
    %470 = vector.broadcast %469 : vector<1x32xf32> to vector<4x32xf32>
    %471 = arith.mulf %468, %470 : vector<4x32xf32>
    %c0_151 = arith.constant 0 : index
    %c0_152 = arith.constant 0 : index
    %472 = vector.load %arg9[%c0_151, %c0_152] : memref<1x32xf32, #tpu.memory_space<vmem>>, vector<1x32xf32>
    %473 = vector.broadcast %472 : vector<1x32xf32> to vector<4x32xf32>
    %474 = arith.addf %471, %473 : vector<4x32xf32>
    %475 = math.tanh %474 : vector<4x32xf32>
    %c0_153 = arith.constant 0 : index
    %c0_154 = arith.constant 0 : index
    %476 = vector.load %arg10[%c0_153, %c0_154] : memref<32x10xf32, #tpu.memory_space<vmem>>, vector<32x10xf32>
    %cst_155 = arith.constant dense<0.000000e+00> : vector<4x10xf32>
    %477 = tpu.matmul %475, %476, %cst_155 {dimension_numbers = #tpu.dot_dimension_numbers<[1], [0], [0], [1], [0, 0, 1, 1], [], []>} : vector<4x32xf32>, vector<32x10xf32>, vector<4x10xf32> -> vector<4x10xf32>
    %c0_156 = arith.constant 0 : index
    %c0_157 = arith.constant 0 : index
    %478 = vector.load %arg11[%c0_156, %c0_157] : memref<1x10xf32, #tpu.memory_space<vmem>>, vector<1x10xf32>
    %479 = vector.broadcast %478 : vector<1x10xf32> to vector<4x10xf32>
    %480 = arith.addf %477, %479 : vector<4x10xf32>
    %c0_158 = arith.constant 0 : index
    %c0_159 = arith.constant 0 : index
    %481 = vector.load %arg12[%c0_158, %c0_159] : memref<4x10xf32, #tpu.memory_space<vmem>>, vector<4x10xf32>
    tpu.vector_store %arg12[%c0_158, %c0_159], %480 {strides = array<i32>} : memref<4x10xf32, #tpu.memory_space<vmem>>, vector<4x10xf32>,
    return
  }
}

</mosaic_0001>

<llo_original>
// kernel: tpu_custom_call.1
$region0: #{tpu_custom_call.1}
  #allocation0 [shape = 'u32[]', space=smem, size = 0x4, offset = 0x4, fixed_abs, tag = 'smem constant byte address 0x4 - core index']
  #allocation1 [shape = 'u32[144,128]{1,0:T(1,128)}', space=vmem, size = 0x12000, scoped, tag = 'internal scratch']
  #allocation2 [shape = 'f32[32,32]{1,0:T(8,128)}', space=vmem, size = 0x4000, scoped, tag = 'scratch operand']
  %s0 = inlined_call_operand.vmem [shape: f32[32,16], index: 0, kind: input, shape index: {}]
  %s1 = inlined_call_operand.hbm [shape: f32[16,128], index: 1, kind: input, shape index: {}]
  %s2 = inlined_call_operand.vmem [shape: f32[32,128], index: 2, kind: input, shape index: {}]
  %s3 = inlined_call_operand.vmem [shape: f32[1,128], index: 3, kind: input, shape index: {}]
  %s4 = inlined_call_operand.vmem [shape: f32[32,128], index: 4, kind: input, shape index: {}]
  %s5 = inlined_call_operand.vmem [shape: f32[32,128], index: 5, kind: input, shape index: {}]
  %s6 = inlined_call_operand.vmem [shape: f32[1,128], index: 6, kind: input, shape index: {}]
  %s7 = inlined_call_operand.vmem [shape: f32[2,4,32], index: 7, kind: input, shape index: {}]
  %s8 = inlined_call_operand.vmem [shape: f32[1,32], index: 8, kind: input, shape index: {}]
  %s9 = inlined_call_operand.vmem [shape: f32[1,32], index: 9, kind: input, shape index: {}]
  %s10 = inlined_call_operand.vmem [shape: f32[32,10], index: 10, kind: input, shape index: {}]
  %s11 = inlined_call_operand.vmem [shape: f32[1,10], index: 11, kind: input, shape index: {}]
  %s12 = inlined_call_operand.hbm [shape: f32[4,10], index: 12, kind: output, shape index: {}]
  %s13 = sld [smem:[#allocation0]]
  $region62: #{tpu_custom_call.1} parent=0
    _
  %s15 = ssub.s32 1, %s13
  %s16 = scalar_select 0, %s15, %s13
  $region1: #{tpu_custom_call.1} parent=0
    #allocation3 [shape = 'u8[8192]{0}', space=vmem, size = 0x2000, scoped, tag = 'input window, operand 1, single buffered']
    #allocation4 [shape = 's32[1]{0}', space=sflag, size = 0x4, scoped, tag = 'scoped memory for tpu_custom_call.1']
    #allocation5 [shape = 's32[1]{0}', space=sflag, size = 0x4, scoped, tag = 'scoped memory for tpu_custom_call.1']
    #allocation6 [shape = 'u8[2048]{0}', space=vmem, size = 0x800, scoped, tag = 'output window, operand 0, single buffered']
    %17 = vsyncpa [#allocation4], 0
    %18 = vsyncpa [#allocation5], 0
    // Predicated region
    $region2: #{tpu_custom_call.1} parent=1 // pred_check
      _
    $region3: #{tpu_custom_call.1} parent=1 // pred_check_branch
      %20 = sbr.rel (0) target = $region5
    $region4: #{tpu_custom_call.1} parent=1 // pred_region
      _
    $region5: #{tpu_custom_call.1} parent=1 // pred_fallthru
      _
    // Predicated region
    $region6: #{tpu_custom_call.1} parent=1 // pred_check
      _
    $region7: #{tpu_custom_call.1} parent=1 // pred_check_branch
      %22 = sbr.rel (0) target = $region9
    $region8: #{tpu_custom_call.1} parent=1 // pred_region
      %s24 = ssub.s32 256, 256
      %25 = vsyncadd [#allocation4], %s24
      %s26 = sshll.u32 [#allocation3], 4
      %s27 = int_to_ptr.vmem [resolvable:$true] %s26
      %32 = dma.hbm_to_vmem [thread:$0]  %s1, 256, %s27, [#allocation4], 128, 128, 8
    $region9: #{tpu_custom_call.1} parent=1 // pred_fallthru
      _
    // Predicated region
    $region10: #{tpu_custom_call.1} parent=1 // pred_check
      _
    $region11: #{tpu_custom_call.1} parent=1 // pred_check_branch
      %34 = sbr.rel (0) target = $region13
    $region12: #{tpu_custom_call.1} parent=1 // pred_region
      _
    $region13: #{tpu_custom_call.1} parent=1 // pred_fallthru
      _
    // Predicated region
    $region14: #{tpu_custom_call.1} parent=1 // pred_check
      _
    $region15: #{tpu_custom_call.1} parent=1 // pred_check_branch
      %36 = sbr.rel (0) target = $region17
    $region16: #{tpu_custom_call.1} parent=1 // pred_region
      _
    $region17: #{tpu_custom_call.1} parent=1 // pred_fallthru
      _
    // Predicated region
    $region18: #{tpu_custom_call.1} parent=1 // pred_check
      _
    $region19: #{tpu_custom_call.1} parent=1 // pred_check_branch
      %38 = sbr.rel (0) target = $region21
    $region20: #{tpu_custom_call.1} parent=1 // pred_region
      _
    $region21: #{tpu_custom_call.1} parent=1 // pred_fallthru
      _
    // Predicated region
    $region22: #{tpu_custom_call.1} parent=1 // pred_check
      _
    $region23: #{tpu_custom_call.1} parent=1 // pred_check_branch
      %40 = sbr.rel (0) target = $region25
    $region24: #{tpu_custom_call.1} parent=1 // pred_region
      _
    $region25: #{tpu_custom_call.1} parent=1 // pred_fallthru
      _
    // Predicated region
    $region26: #{tpu_custom_call.1} parent=1 // pred_check
      _
    $region27: #{tpu_custom_call.1} parent=1 // pred_check_branch
      %42 = sbr.rel (0) target = $region29
    $region28: #{tpu_custom_call.1} parent=1 // pred_region
      _
    $region29: #{tpu_custom_call.1} parent=1 // pred_fallthru
      _
    // Predicated region
    $region30: #{tpu_custom_call.1} parent=1 // pred_check
      _
    $region31: #{tpu_custom_call.1} parent=1 // pred_check_branch
      %44 = sbr.rel (0) target = $region33
    $region32: #{tpu_custom_call.1} parent=1 // pred_region
      _
    $region33: #{tpu_custom_call.1} parent=1 // pred_fallthru
      _
    // Predicated region
    $region34: #{tpu_custom_call.1} parent=1 // pred_check
      _
    $region35: #{tpu_custom_call.1} parent=1 // pred_check_branch
      %46 = sbr.rel (0) target = $region37
    $region36: #{tpu_custom_call.1} parent=1 // pred_region
      _
    $region37: #{tpu_custom_call.1} parent=1 // pred_fallthru
      _
    // Predicated region
    $region38: #{tpu_custom_call.1} parent=1 // pred_check
      _
    $region39: #{tpu_custom_call.1} parent=1 // pred_check_branch
      %48 = sbr.rel (0) target = $region41
    $region40: #{tpu_custom_call.1} parent=1 // pred_region
      _
    $region41: #{tpu_custom_call.1} parent=1 // pred_fallthru
      _
    // Predicated region
    $region42: #{tpu_custom_call.1} parent=1 // pred_check
      _
    $region43: #{tpu_custom_call.1} parent=1 // pred_check_branch
      %50 = sbr.rel (0) target = $region45
    $region44: #{tpu_custom_call.1} parent=1 // pred_region
      _
    $region45: #{tpu_custom_call.1} parent=1 // pred_fallthru
      _
    // Predicated region
    $region46: #{tpu_custom_call.1} parent=1 // pred_check
      _
    $region47: #{tpu_custom_call.1} parent=1 // pred_check_branch
      %52 = sbr.rel (0) target = $region49
    $region48: #{tpu_custom_call.1} parent=1 // pred_region
      _
    $region49: #{tpu_custom_call.1} parent=1 // pred_fallthru
      _
    // Predicated region
    $region50: #{tpu_custom_call.1} parent=1 // pred_check
      _
    $region51: #{tpu_custom_call.1} parent=1 // pred_check_branch
      %54 = sbr.rel (0) target = $region53
    $region52: #{tpu_custom_call.1} parent=1 // pred_region
      %55 = dma.done [#allocation4], 256
    $region53: #{tpu_custom_call.1} parent=1 // pred_fallthru
      _
    %v56 = vlaneseq
    %v57 = vand.u32 %v56, 127
    %vm58 = vcmp.ge.s32.totalorder %v57, 64
    %vm59 = vcmp.lt.s32.totalorder %v57, 96
    %vm60 = vmand %vm58, %vm59
    %v61 = vsel %vm60, 1.0, 0.5
    %v62 = vld [vmem:[#allocation3] sm:$0xff]
    %v63 = vld [vmem:[#allocation3 + $0x8] sm:$0xff]
    %v64 = vld [vmem:[%s2] sm:$0xff]
    %v65 = vld [vmem:[%s2 + $0x8] sm:$0xff]
    %v66 = vld [vmem:[%s2 + $0x10] sm:$0xff]
    %v67 = vld [vmem:[%s2 + $0x18] sm:$0xff]
    %v68 = vld [vmem:[%s3] sm:$0x1]
    %v69 = vld [vmem:[%s0] sm:$0xff]
    %v70 = vld [vmem:[%s0 + $0x8] sm:$0xff]
    %v71 = vld [vmem:[%s0 + $0x10] sm:$0xff]
    %v72 = vld [vmem:[%s0 + $0x18] sm:$0xff]
    %v74 = vlaneseq
    %v75 = vshrl.u32 %v74, 7
    %v76 = vsub.s32 0, %v75
    %v77 = vrot.slane %v68, %v76
    %vm79 = vcmask 130048
    %v81 = vsel %vm79, %v69, 0
    %v84 = vsel %vm79, %v70, 0
    %v87 = vsel %vm79, %v71, 0
    %v90 = vsel %vm79, %v72, 0
    %92 = vmatprep.subr.mxu0 0.0
    %93 = vmatpush1.msra.mxu0 %v62
    %94 = vmatprep.subr.mxu0 0.0
    %95 = vmatpush1.msra.mxu0 %v63
    %96 = vmatprep.subr.mxu0 0.0
    %97 = vmatpush1.msra.mxu0 0.0
    %98 = vmatprep.subr.mxu0 0.0
    %99 = vmatpush1.msra.mxu0 0.0
    %100 = vmatprep.subr.mxu0 0.0
    %101 = vmatpush1.msra.mxu0 0.0
    %102 = vmatprep.subr.mxu0 0.0
    %103 = vmatpush1.msra.mxu0 0.0
    %104 = vmatprep.subr.mxu0 0.0
    %105 = vmatpush1.msra.mxu0 0.0
    %106 = vmatprep.subr.mxu0 0.0
    %107 = vmatpush1.msra.mxu0 0.0
    %108 = vmatprep.subr.mxu0 0.0
    %109 = vmatpush1.msra.mxu0 0.0
    %110 = vmatprep.subr.mxu0 0.0
    %111 = vmatpush1.msra.mxu0 0.0
    %112 = vmatprep.subr.mxu0 0.0
    %113 = vmatpush1.msra.mxu0 0.0
    %114 = vmatprep.subr.mxu0 0.0
    %115 = vmatpush1.msra.mxu0 0.0
    %116 = vmatprep.subr.mxu0 0.0
    %117 = vmatpush1.msra.mxu0 0.0
    %118 = vmatprep.subr.mxu0 0.0
    %119 = vmatpush1.msra.mxu0 0.0
    %120 = vmatprep.subr.mxu0 0.0
    %121 = vmatpush1.msra.mxu0 0.0
    %122 = vmatprep.subr.mxu0 0.0
    %123 = vmatpush1.msra.mxu0 0.0
    %124 = vmatprep.subr.mxu0 0.0
    %125 = vmatpush1.msra.mxu0 0.0
    %126 = vmatprep.subr.mxu0 0.0
    %127 = vmatpush1.msra.mxu0 0.0
    %128 = vmatprep.subr.mxu0 0.0
    %129 = vmatpush1.msra.mxu0 0.0
    %130 = vmatprep.subr.mxu0 0.0
    %131 = vmatpush1.msra.mxu0 0.0
    %132 = vmatprep.subr.mxu0 0.0
    %133 = vmatpush1.msra.mxu0 0.0
    %134 = vmatprep.subr.mxu0 0.0
    %135 = vmatpush1.msra.mxu0 0.0
    %136 = vmatprep.subr.mxu0 0.0
    %137 = vmatpush1.msra.mxu0 0.0
    %138 = vmatprep.subr.mxu0 0.0
    %139 = vmatpush1.msra.mxu0 0.0
    %140 = vmatprep.subr.mxu0 0.0
    %141 = vmatpush1.msra.mxu0 0.0
    %142 = vmatprep.subr.mxu0 0.0
    %143 = vmatpush1.msra.mxu0 0.0
    %144 = vmatprep.subr.mxu0 0.0
    %145 = vmatpush1.msra.mxu0 0.0
    %146 = vmatprep.subr.mxu0 0.0
    %147 = vmatpush1.msra.mxu0 0.0
    %148 = vmatprep.subr.mxu0 0.0
    %149 = vmatpush1.msra.mxu0 0.0
    %150 = vmatprep.subr.mxu0 0.0
    %151 = vmatpush1.msra.mxu0 0.0
    %152 = vmatprep.subr.mxu0 0.0
    %153 = vmatpush1.msra.mxu0 0.0
    %154 = vmatprep.subr.mxu0 0.0
    %155 = vmatpush1.msra.mxu0 0.0
    %156 = vmatprep.mubr.f32.mxu0 0.0
    %157 = vmatmul.mubr.f32.gmra.mrb[0].mxu0 %v81
    %v158 = vpop.f32.mrb[0].mxu0
    %v159 = vadd.f32 %v77, %v158
    %v160 = vpop.f32.mrb[0].mxu0
    %161 = vmatprep.mubr.f32.mxu0 0.0
    %162 = vmatmul.mubr.f32.gmra.mrb[0].mxu0 %v84
    %v163 = vpop.f32.mrb[0].mxu0
    %v164 = vadd.f32 %v77, %v163
    %v165 = vpop.f32.mrb[0].mxu0
    %166 = vmatprep.mubr.f32.mxu0 0.0
    %167 = vmatmul.mubr.f32.gmra.mrb[0].mxu0 %v87
    %v168 = vpop.f32.mrb[0].mxu0
    %v169 = vadd.f32 %v77, %v168
    %v170 = vpop.f32.mrb[0].mxu0
    %171 = vmatprep.mubr.f32.mxu0 0.0
    %172 = vmatmul.mubr.f32.gmra.mrb[0].mxu0 %v90
    %v173 = vpop.f32.mrb[0].mxu0
    %v174 = vadd.f32 %v77, %v173
    %v175 = vpop.f32.mrb[0].mxu0
    %176 = vdwg.mxu0
    %v177 = vld [vmem:[%s7] sm:$0xf]
    %vm178 = vcmask 261120
    %v180 = vsel %vm178, %v177, 0
    %182 = vmatprep.subr.mxu0 0.0
    %183 = vmatpush1.msra.mxu0 %v64
    %184 = vmatprep.subr.mxu0 0.0
    %185 = vmatpush1.msra.mxu0 %v65
    %186 = vmatprep.subr.mxu0 0.0
    %187 = vmatpush1.msra.mxu0 %v66
    %188 = vmatprep.subr.mxu0 0.0
    %189 = vmatpush1.msra.mxu0 %v67
    %190 = vmatprep.subr.mxu0 0.0
    %191 = vmatpush1.msra.mxu0 0.0
    %192 = vmatprep.subr.mxu0 0.0
    %193 = vmatpush1.msra.mxu0 0.0
    %194 = vmatprep.subr.mxu0 0.0
    %195 = vmatpush1.msra.mxu0 0.0
    %196 = vmatprep.subr.mxu0 0.0
    %197 = vmatpush1.msra.mxu0 0.0
    %198 = vmatprep.subr.mxu0 0.0
    %199 = vmatpush1.msra.mxu0 0.0
    %200 = vmatprep.subr.mxu0 0.0
    %201 = vmatpush1.msra.mxu0 0.0
    %202 = vmatprep.subr.mxu0 0.0
    %203 = vmatpush1.msra.mxu0 0.0
    %204 = vmatprep.subr.mxu0 0.0
    %205 = vmatpush1.msra.mxu0 0.0
    %206 = vmatprep.subr.mxu0 0.0
    %207 = vmatpush1.msra.mxu0 0.0
    %208 = vmatprep.subr.mxu0 0.0
    %209 = vmatpush1.msra.mxu0 0.0
    %210 = vmatprep.subr.mxu0 0.0
    %211 = vmatpush1.msra.mxu0 0.0
    %212 = vmatprep.subr.mxu0 0.0
    %213 = vmatpush1.msra.mxu0 0.0
    %214 = vmatprep.subr.mxu0 0.0
    %215 = vmatpush1.msra.mxu0 0.0
    %216 = vmatprep.subr.mxu0 0.0
    %217 = vmatpush1.msra.mxu0 0.0
    %218 = vmatprep.subr.mxu0 0.0
    %219 = vmatpush1.msra.mxu0 0.0
    %220 = vmatprep.subr.mxu0 0.0
    %221 = vmatpush1.msra.mxu0 0.0
    %222 = vmatprep.subr.mxu0 0.0
    %223 = vmatpush1.msra.mxu0 0.0
    %224 = vmatprep.subr.mxu0 0.0
    %225 = vmatpush1.msra.mxu0 0.0
    %226 = vmatprep.subr.mxu0 0.0
    %227 = vmatpush1.msra.mxu0 0.0
    %228 = vmatprep.subr.mxu0 0.0
    %229 = vmatpush1.msra.mxu0 0.0
    %230 = vmatprep.subr.mxu0 0.0
    %231 = vmatpush1.msra.mxu0 0.0
    %232 = vmatprep.subr.mxu0 0.0
    %233 = vmatpush1.msra.mxu0 0.0
    %234 = vmatprep.subr.mxu0 0.0
    %235 = vmatpush1.msra.mxu0 0.0
    %236 = vmatprep.subr.mxu0 0.0
    %237 = vmatpush1.msra.mxu0 0.0
    %238 = vmatprep.subr.mxu0 0.0
    %239 = vmatpush1.msra.mxu0 0.0
    %240 = vmatprep.subr.mxu0 0.0
    %241 = vmatpush1.msra.mxu0 0.0
    %242 = vmatprep.subr.mxu0 0.0
    %243 = vmatpush1.msra.mxu0 0.0
    %244 = vmatprep.subr.mxu0 0.0
    %245 = vmatpush1.msra.mxu0 0.0
    %246 = vmatprep.mubr.f32.mxu0 0.0
    %247 = vmatmul.mubr.f32.gmra.mrb[0].mxu0 %v180
    %v248 = vpop.f32.mrb[0].mxu0
    %v249 = vadd.f32 0.0, %v248
    %v250 = vpop.f32.mrb[0].mxu0
    %251 = vdwg.mxu0
    %v252 = vadd.f32 %v159, %v249
    %v253 = vmul.f32 %v252, %v61
    %v254 = vtanh.pop %v253
    %v255 = vmul.f32 %v254, 0.5
    %v256 = vadd.f32 %v255, 0.5
    %257 = vrot.lane.b32.xlu0 %v177, 32
    %v258 = vpop.permute.xlu0 %257
    %v260 = vmul.f32 %v256, %v258
    %262 = vrot.lane.b32.xlu0 %v254, 64
    %v263 = vpop.permute.xlu0 %262
    %v265 = vmul.f32 %v256, %v263
    %267 = vrot.lane.b32.xlu0 %v265, 32
    %v268 = vpop.permute.xlu0 %267
    %v270 = vadd.f32 %v260, %v268
    %v271 = vtanh.pop %v270
    %273 = vrot.lane.b32.xlu0 %v271, 64
    %v274 = vpop.permute.xlu0 %273
    %v276 = vmul.f32 %v256, %v274
    %278 = vrot.lane.b32.xlu0 %v276, 32
    %v279 = vpop.permute.xlu0 %278
    %vm281 = vcmask 257024
    %282 = vst.msk [vmem:[#allocation2] sm:$0xf] %vm281, %v279
    %v283 = vsel %vm178, %v279, 0
    %285 = vmatprep.subr.mxu0 0.0
    %286 = vmatpush1.msra.mxu0 %v64
    %287 = vmatprep.subr.mxu0 0.0
    %288 = vmatpush1.msra.mxu0 %v65
    %289 = vmatprep.subr.mxu0 0.0
    %290 = vmatpush1.msra.mxu0 %v66
    %291 = vmatprep.subr.mxu0 0.0
    %292 = vmatpush1.msra.mxu0 %v67
    %293 = vmatprep.subr.mxu0 0.0
    %294 = vmatpush1.msra.mxu0 0.0
    %295 = vmatprep.subr.mxu0 0.0
    %296 = vmatpush1.msra.mxu0 0.0
    %297 = vmatprep.subr.mxu0 0.0
    %298 = vmatpush1.msra.mxu0 0.0
    %299 = vmatprep.subr.mxu0 0.0
    %300 = vmatpush1.msra.mxu0 0.0
    %301 = vmatprep.subr.mxu0 0.0
    %302 = vmatpush1.msra.mxu0 0.0
    %303 = vmatprep.subr.mxu0 0.0
    %304 = vmatpush1.msra.mxu0 0.0
    %305 = vmatprep.subr.mxu0 0.0
    %306 = vmatpush1.msra.mxu0 0.0
    %307 = vmatprep.subr.mxu0 0.0
    %308 = vmatpush1.msra.mxu0 0.0
    %309 = vmatprep.subr.mxu0 0.0
    %310 = vmatpush1.msra.mxu0 0.0
    %311 = vmatprep.subr.mxu0 0.0
    %312 = vmatpush1.msra.mxu0 0.0
    %313 = vmatprep.subr.mxu0 0.0
    %314 = vmatpush1.msra.mxu0 0.0
    %315 = vmatprep.subr.mxu0 0.0
    %316 = vmatpush1.msra.mxu0 0.0
    %317 = vmatprep.subr.mxu0 0.0
    %318 = vmatpush1.msra.mxu0 0.0
    %319 = vmatprep.subr.mxu0 0.0
    %320 = vmatpush1.msra.mxu0 0.0
    %321 = vmatprep.subr.mxu0 0.0
    %322 = vmatpush1.msra.mxu0 0.0
    %323 = vmatprep.subr.mxu0 0.0
    %324 = vmatpush1.msra.mxu0 0.0
    %325 = vmatprep.subr.mxu0 0.0
    %326 = vmatpush1.msra.mxu0 0.0
    %327 = vmatprep.subr.mxu0 0.0
    %328 = vmatpush1.msra.mxu0 0.0
    %329 = vmatprep.subr.mxu0 0.0
    %330 = vmatpush1.msra.mxu0 0.0
    %331 = vmatprep.subr.mxu0 0.0
    %332 = vmatpush1.msra.mxu0 0.0
    %333 = vmatprep.subr.mxu0 0.0
    %334 = vmatpush1.msra.mxu0 0.0
    %335 = vmatprep.subr.mxu0 0.0
    %336 = vmatpush1.msra.mxu0 0.0
    %337 = vmatprep.subr.mxu0 0.0
    %338 = vmatpush1.msra.mxu0 0.0
    %339 = vmatprep.subr.mxu0 0.0
    %340 = vmatpush1.msra.mxu0 0.0
    %341 = vmatprep.subr.mxu0 0.0
    %342 = vmatpush1.msra.mxu0 0.0
    %343 = vmatprep.subr.mxu0 0.0
    %344 = vmatpush1.msra.mxu0 0.0
    %345 = vmatprep.subr.mxu0 0.0
    %346 = vmatpush1.msra.mxu0 0.0
    %347 = vmatprep.subr.mxu0 0.0
    %348 = vmatpush1.msra.mxu0 0.0
    %349 = vmatprep.mubr.f32.mxu0 0.0
    %350 = vmatmul.mubr.f32.gmra.mrb[0].mxu0 %v283
    %v351 = vpop.f32.mrb[0].mxu0
    %v352 = vadd.f32 0.0, %v351
    %v353 = vpop.f32.mrb[0].mxu0
    %354 = vdwg.mxu0
    %v356 = vrot.slane %v352, 4
    %v358 = vadd.f32 %v159, %v356
    %v359 = vmul.f32 %v358, %v61
    %v360 = vtanh.pop %v359
    %v361 = vmul.f32 %v360, 0.5
    %v362 = vadd.f32 %v361, 0.5
    %v364 = vrot.slane %v270, 4
    %v366 = vmul.f32 %v362, %v364
    %368 = vrot.lane.b32.xlu0 %v360, 64
    %v369 = vpop.permute.xlu0 %368
    %v371 = vmul.f32 %v362, %v369
    %373 = vrot.lane.b32.xlu0 %v371, 32
    %v374 = vpop.permute.xlu0 %373
    %v376 = vadd.f32 %v366, %v374
    %v377 = vtanh.pop %v376
    %379 = vrot.lane.b32.xlu0 %v377, 64
    %v380 = vpop.permute.xlu0 %379
    %v382 = vmul.f32 %v362, %v380
    %384 = vrot.lane.b32.xlu0 %v382, 32
    %v385 = vpop.permute.xlu0 %384
    %vm387 = vcmask 261124
    %388 = vst.msk [vmem:[#allocation2] sm:$0xf0] %vm387, %v385
    %v389 = vrot.slane %v382, 4
    %390 = vrot.lane.b32.xlu0 %v389, 32
    %v391 = vpop.permute.xlu0 %390
    %v392 = vsel %vm178, %v391, 0
    %394 = vmatprep.subr.mxu0 0.0
    %395 = vmatpush1.msra.mxu0 %v64
    %396 = vmatprep.subr.mxu0 0.0
    %397 = vmatpush1.msra.mxu0 %v65
    %398 = vmatprep.subr.mxu0 0.0
    %399 = vmatpush1.msra.mxu0 %v66
    %400 = vmatprep.subr.mxu0 0.0
    %401 = vmatpush1.msra.mxu0 %v67
    %402 = vmatprep.subr.mxu0 0.0
    %403 = vmatpush1.msra.mxu0 0.0
    %404 = vmatprep.subr.mxu0 0.0
    %405 = vmatpush1.msra.mxu0 0.0
    %406 = vmatprep.subr.mxu0 0.0
    %407 = vmatpush1.msra.mxu0 0.0
    %408 = vmatprep.subr.mxu0 0.0
    %409 = vmatpush1.msra.mxu0 0.0
    %410 = vmatprep.subr.mxu0 0.0
    %411 = vmatpush1.msra.mxu0 0.0
    %412 = vmatprep.subr.mxu0 0.0
    %413 = vmatpush1.msra.mxu0 0.0
    %414 = vmatprep.subr.mxu0 0.0
    %415 = vmatpush1.msra.mxu0 0.0
    %416 = vmatprep.subr.mxu0 0.0
    %417 = vmatpush1.msra.mxu0 0.0
    %418 = vmatprep.subr.mxu0 0.0
    %419 = vmatpush1.msra.mxu0 0.0
    %420 = vmatprep.subr.mxu0 0.0
    %421 = vmatpush1.msra.mxu0 0.0
    %422 = vmatprep.subr.mxu0 0.0
    %423 = vmatpush1.msra.mxu0 0.0
    %424 = vmatprep.subr.mxu0 0.0
    %425 = vmatpush1.msra.mxu0 0.0
    %426 = vmatprep.subr.mxu0 0.0
    %427 = vmatpush1.msra.mxu0 0.0
    %428 = vmatprep.subr.mxu0 0.0
    %429 = vmatpush1.msra.mxu0 0.0
    %430 = vmatprep.subr.mxu0 0.0
    %431 = vmatpush1.msra.mxu0 0.0
    %432 = vmatprep.subr.mxu0 0.0
    %433 = vmatpush1.msra.mxu0 0.0
    %434 = vmatprep.subr.mxu0 0.0
    %435 = vmatpush1.msra.mxu0 0.0
    %436 = vmatprep.subr.mxu0 0.0
    %437 = vmatpush1.msra.mxu0 0.0
    %438 = vmatprep.subr.mxu0 0.0
    %439 = vmatpush1.msra.mxu0 0.0
    %440 = vmatprep.subr.mxu0 0.0
    %441 = vmatpush1.msra.mxu0 0.0
    %442 = vmatprep.subr.mxu0 0.0
    %443 = vmatpush1.msra.mxu0 0.0
    %444 = vmatprep.subr.mxu0 0.0
    %445 = vmatpush1.msra.mxu0 0.0
    %446 = vmatprep.subr.mxu0 0.0
    %447 = vmatpush1.msra.mxu0 0.0
    %448 = vmatprep.subr.mxu0 0.0
    %449 = vmatpush1.msra.mxu0 0.0
    %450 = vmatprep.subr.mxu0 0.0
    %451 = vmatpush1.msra.mxu0 0.0
    %452 = vmatprep.subr.mxu0 0.0
    %453 = vmatpush1.msra.mxu0 0.0
    %454 = vmatprep.subr.mxu0 0.0
    %455 = vmatpush1.msra.mxu0 0.0
    %456 = vmatprep.subr.mxu0 0.0
    %457 = vmatpush1.msra.mxu0 0.0
    %458 = vmatprep.mubr.f32.mxu0 0.0
    %459 = vmatmul.mubr.f32.gmra.mrb[0].mxu0 %v392
    %v460 = vpop.f32.mrb[0].mxu0
    %v461 = vadd.f32 0.0, %v460
    %v462 = vpop.f32.mrb[0].mxu0
    %463 = vdwg.mxu0
    %v464 = vadd.f32 %v164, %v461
    %v465 = vmul.f32 %v464, %v61
    %v466 = vtanh.pop %v465
    %v467 = vmul.f32 %v466, 0.5
    %v468 = vadd.f32 %v467, 0.5
    %v470 = vrot.slane %v376, 4
    %v472 = vmul.f32 %v468, %v470
    %474 = vrot.lane.b32.xlu0 %v466, 64
    %v475 = vpop.permute.xlu0 %474
    %v477 = vmul.f32 %v468, %v475
    %479 = vrot.lane.b32.xlu0 %v477, 32
    %v480 = vpop.permute.xlu0 %479
    %v482 = vadd.f32 %v472, %v480
    %v483 = vtanh.pop %v482
    %485 = vrot.lane.b32.xlu0 %v483, 64
    %v486 = vpop.permute.xlu0 %485
    %v488 = vmul.f32 %v468, %v486
    %490 = vrot.lane.b32.xlu0 %v488, 32
    %v491 = vpop.permute.xlu0 %490
    %493 = vst.msk [vmem:[#allocation2 + $0x8] sm:$0xf] %vm281, %v491
    %v494 = vsel %vm178, %v491, 0
    %496 = vmatprep.subr.mxu0 0.0
    %497 = vmatpush1.msra.mxu0 %v64
    %498 = vmatprep.subr.mxu0 0.0
    %499 = vmatpush1.msra.mxu0 %v65
    %500 = vmatprep.subr.mxu0 0.0
    %501 = vmatpush1.msra.mxu0 %v66
    %502 = vmatprep.subr.mxu0 0.0
    %503 = vmatpush1.msra.mxu0 %v67
    %504 = vmatprep.subr.mxu0 0.0
    %505 = vmatpush1.msra.mxu0 0.0
    %506 = vmatprep.subr.mxu0 0.0
    %507 = vmatpush1.msra.mxu0 0.0
    %508 = vmatprep.subr.mxu0 0.0
    %509 = vmatpush1.msra.mxu0 0.0
    %510 = vmatprep.subr.mxu0 0.0
    %511 = vmatpush1.msra.mxu0 0.0
    %512 = vmatprep.subr.mxu0 0.0
    %513 = vmatpush1.msra.mxu0 0.0
    %514 = vmatprep.subr.mxu0 0.0
    %515 = vmatpush1.msra.mxu0 0.0
    %516 = vmatprep.subr.mxu0 0.0
    %517 = vmatpush1.msra.mxu0 0.0
    %518 = vmatprep.subr.mxu0 0.0
    %519 = vmatpush1.msra.mxu0 0.0
    %520 = vmatprep.subr.mxu0 0.0
    %521 = vmatpush1.msra.mxu0 0.0
    %522 = vmatprep.subr.mxu0 0.0
    %523 = vmatpush1.msra.mxu0 0.0
    %524 = vmatprep.subr.mxu0 0.0
    %525 = vmatpush1.msra.mxu0 0.0
    %526 = vmatprep.subr.mxu0 0.0
    %527 = vmatpush1.msra.mxu0 0.0
    %528 = vmatprep.subr.mxu0 0.0
    %529 = vmatpush1.msra.mxu0 0.0
    %530 = vmatprep.subr.mxu0 0.0
    %531 = vmatpush1.msra.mxu0 0.0
    %532 = vmatprep.subr.mxu0 0.0
    %533 = vmatpush1.msra.mxu0 0.0
    %534 = vmatprep.subr.mxu0 0.0
    %535 = vmatpush1.msra.mxu0 0.0
    %536 = vmatprep.subr.mxu0 0.0
    %537 = vmatpush1.msra.mxu0 0.0
    %538 = vmatprep.subr.mxu0 0.0
    %539 = vmatpush1.msra.mxu0 0.0
    %540 = vmatprep.subr.mxu0 0.0
    %541 = vmatpush1.msra.mxu0 0.0
    %542 = vmatprep.subr.mxu0 0.0
    %543 = vmatpush1.msra.mxu0 0.0
    %544 = vmatprep.subr.mxu0 0.0
    %545 = vmatpush1.msra.mxu0 0.0
    %546 = vmatprep.subr.mxu0 0.0
    %547 = vmatpush1.msra.mxu0 0.0
    %548 = vmatprep.subr.mxu0 0.0
    %549 = vmatpush1.msra.mxu0 0.0
    %550 = vmatprep.subr.mxu0 0.0
    %551 = vmatpush1.msra.mxu0 0.0
    %552 = vmatprep.subr.mxu0 0.0
    %553 = vmatpush1.msra.mxu0 0.0
    %554 = vmatprep.subr.mxu0 0.0
    %555 = vmatpush1.msra.mxu0 0.0
    %556 = vmatprep.subr.mxu0 0.0
    %557 = vmatpush1.msra.mxu0 0.0
    %558 = vmatprep.subr.mxu0 0.0
    %559 = vmatpush1.msra.mxu0 0.0
    %560 = vmatprep.mubr.f32.mxu0 0.0
    %561 = vmatmul.mubr.f32.gmra.mrb[0].mxu0 %v494
    %v562 = vpop.f32.mrb[0].mxu0
    %v563 = vadd.f32 0.0, %v562
    %v564 = vpop.f32.mrb[0].mxu0
    %565 = vdwg.mxu0
    %v567 = vrot.slane %v563, 4
    %v569 = vadd.f32 %v164, %v567
    %v570 = vmul.f32 %v569, %v61
    %v571 = vtanh.pop %v570
    %v572 = vmul.f32 %v571, 0.5
    %v573 = vadd.f32 %v572, 0.5
    %v575 = vrot.slane %v482, 4
    %v577 = vmul.f32 %v573, %v575
    %579 = vrot.lane.b32.xlu0 %v571, 64
    %v580 = vpop.permute.xlu0 %579
    %v582 = vmul.f32 %v573, %v580
    %584 = vrot.lane.b32.xlu0 %v582, 32
    %v585 = vpop.permute.xlu0 %584
    %v587 = vadd.f32 %v577, %v585
    %v588 = vtanh.pop %v587
    %590 = vrot.lane.b32.xlu0 %v588, 64
    %v591 = vpop.permute.xlu0 %590
    %v593 = vmul.f32 %v573, %v591
    %595 = vrot.lane.b32.xlu0 %v593, 32
    %v596 = vpop.permute.xlu0 %595
    %598 = vst.msk [vmem:[#allocation2 + $0x8] sm:$0xf0] %vm387, %v596
    %v599 = vrot.slane %v593, 4
    %600 = vrot.lane.b32.xlu0 %v599, 32
    %v601 = vpop.permute.xlu0 %600
    %v602 = vsel %vm178, %v601, 0
    %604 = vmatprep.subr.mxu0 0.0
    %605 = vmatpush1.msra.mxu0 %v64
    %606 = vmatprep.subr.mxu0 0.0
    %607 = vmatpush1.msra.mxu0 %v65
    %608 = vmatprep.subr.mxu0 0.0
    %609 = vmatpush1.msra.mxu0 %v66
    %610 = vmatprep.subr.mxu0 0.0
    %611 = vmatpush1.msra.mxu0 %v67
    %612 = vmatprep.subr.mxu0 0.0
    %613 = vmatpush1.msra.mxu0 0.0
    %614 = vmatprep.subr.mxu0 0.0
    %615 = vmatpush1.msra.mxu0 0.0
    %616 = vmatprep.subr.mxu0 0.0
    %617 = vmatpush1.msra.mxu0 0.0
    %618 = vmatprep.subr.mxu0 0.0
    %619 = vmatpush1.msra.mxu0 0.0
    %620 = vmatprep.subr.mxu0 0.0
    %621 = vmatpush1.msra.mxu0 0.0
    %622 = vmatprep.subr.mxu0 0.0
    %623 = vmatpush1.msra.mxu0 0.0
    %624 = vmatprep.subr.mxu0 0.0
    %625 = vmatpush1.msra.mxu0 0.0
    %626 = vmatprep.subr.mxu0 0.0
    %627 = vmatpush1.msra.mxu0 0.0
    %628 = vmatprep.subr.mxu0 0.0
    %629 = vmatpush1.msra.mxu0 0.0
    %630 = vmatprep.subr.mxu0 0.0
    %631 = vmatpush1.msra.mxu0 0.0
    %632 = vmatprep.subr.mxu0 0.0
    %633 = vmatpush1.msra.mxu0 0.0
    %634 = vmatprep.subr.mxu0 0.0
    %635 = vmatpush1.msra.mxu0 0.0
    %636 = vmatprep.subr.mxu0 0.0
    %637 = vmatpush1.msra.mxu0 0.0
    %638 = vmatprep.subr.mxu0 0.0
    %639 = vmatpush1.msra.mxu0 0.0
    %640 = vmatprep.subr.mxu0 0.0
    %641 = vmatpush1.msra.mxu0 0.0
    %642 = vmatprep.subr.mxu0 0.0
    %643 = vmatpush1.msra.mxu0 0.0
    %644 = vmatprep.subr.mxu0 0.0
    %645 = vmatpush1.msra.mxu0 0.0
    %646 = vmatprep.subr.mxu0 0.0
    %647 = vmatpush1.msra.mxu0 0.0
    %648 = vmatprep.subr.mxu0 0.0
    %649 = vmatpush1.msra.mxu0 0.0
    %650 = vmatprep.subr.mxu0 0.0
    %651 = vmatpush1.msra.mxu0 0.0
    %652 = vmatprep.subr.mxu0 0.0
    %653 = vmatpush1.msra.mxu0 0.0
    %654 = vmatprep.subr.mxu0 0.0
    %655 = vmatpush1.msra.mxu0 0.0
    %656 = vmatprep.subr.mxu0 0.0
    %657 = vmatpush1.msra.mxu0 0.0
    %658 = vmatprep.subr.mxu0 0.0
    %659 = vmatpush1.msra.mxu0 0.0
    %660 = vmatprep.subr.mxu0 0.0
    %661 = vmatpush1.msra.mxu0 0.0
    %662 = vmatprep.subr.mxu0 0.0
    %663 = vmatpush1.msra.mxu0 0.0
    %664 = vmatprep.subr.mxu0 0.0
    %665 = vmatpush1.msra.mxu0 0.0
    %666 = vmatprep.subr.mxu0 0.0
    %667 = vmatpush1.msra.mxu0 0.0
    %668 = vmatprep.mubr.f32.mxu0 0.0
    %669 = vmatmul.mubr.f32.gmra.mrb[0].mxu0 %v602
    %v670 = vpop.f32.mrb[0].mxu0
    %v671 = vadd.f32 0.0, %v670
    %v672 = vpop.f32.mrb[0].mxu0
    %673 = vdwg.mxu0
    %v674 = vadd.f32 %v169, %v671
    %v675 = vmul.f32 %v674, %v61
    %v676 = vtanh.pop %v675
    %v677 = vmul.f32 %v676, 0.5
    %v678 = vadd.f32 %v677, 0.5
    %v680 = vrot.slane %v587, 4
    %v682 = vmul.f32 %v678, %v680
    %684 = vrot.lane.b32.xlu0 %v676, 64
    %v685 = vpop.permute.xlu0 %684
    %v687 = vmul.f32 %v678, %v685
    %689 = vrot.lane.b32.xlu0 %v687, 32
    %v690 = vpop.permute.xlu0 %689
    %v692 = vadd.f32 %v682, %v690
    %v693 = vtanh.pop %v692
    %695 = vrot.lane.b32.xlu0 %v693, 64
    %v696 = vpop.permute.xlu0 %695
    %v698 = vmul.f32 %v678, %v696
    %700 = vrot.lane.b32.xlu0 %v698, 32
    %v701 = vpop.permute.xlu0 %700
    %703 = vst.msk [vmem:[#allocation2 + $0x10] sm:$0xf] %vm281, %v701
    %v704 = vsel %vm178, %v701, 0
    %706 = vmatprep.subr.mxu0 0.0
    %707 = vmatpush1.msra.mxu0 %v64
    %708 = vmatprep.subr.mxu0 0.0
    %709 = vmatpush1.msra.mxu0 %v65
    %710 = vmatprep.subr.mxu0 0.0
    %711 = vmatpush1.msra.mxu0 %v66
    %712 = vmatprep.subr.mxu0 0.0
    %713 = vmatpush1.msra.mxu0 %v67
    %714 = vmatprep.subr.mxu0 0.0
    %715 = vmatpush1.msra.mxu0 0.0
    %716 = vmatprep.subr.mxu0 0.0
    %717 = vmatpush1.msra.mxu0 0.0
    %718 = vmatprep.subr.mxu0 0.0
    %719 = vmatpush1.msra.mxu0 0.0
    %720 = vmatprep.subr.mxu0 0.0
    %721 = vmatpush1.msra.mxu0 0.0
    %722 = vmatprep.subr.mxu0 0.0
    %723 = vmatpush1.msra.mxu0 0.0
    %724 = vmatprep.subr.mxu0 0.0
    %725 = vmatpush1.msra.mxu0 0.0
    %726 = vmatprep.subr.mxu0 0.0
    %727 = vmatpush1.msra.mxu0 0.0
    %728 = vmatprep.subr.mxu0 0.0
    %729 = vmatpush1.msra.mxu0 0.0
    %730 = vmatprep.subr.mxu0 0.0
    %731 = vmatpush1.msra.mxu0 0.0
    %732 = vmatprep.subr.mxu0 0.0
    %733 = vmatpush1.msra.mxu0 0.0
    %734 = vmatprep.subr.mxu0 0.0
    %735 = vmatpush1.msra.mxu0 0.0
    %736 = vmatprep.subr.mxu0 0.0
    %737 = vmatpush1.msra.mxu0 0.0
    %738 = vmatprep.subr.mxu0 0.0
    %739 = vmatpush1.msra.mxu0 0.0
    %740 = vmatprep.subr.mxu0 0.0
    %741 = vmatpush1.msra.mxu0 0.0
    %742 = vmatprep.subr.mxu0 0.0
    %743 = vmatpush1.msra.mxu0 0.0
    %744 = vmatprep.subr.mxu0 0.0
    %745 = vmatpush1.msra.mxu0 0.0
    %746 = vmatprep.subr.mxu0 0.0
    %747 = vmatpush1.msra.mxu0 0.0
    %748 = vmatprep.subr.mxu0 0.0
    %749 = vmatpush1.msra.mxu0 0.0
    %750 = vmatprep.subr.mxu0 0.0
    %751 = vmatpush1.msra.mxu0 0.0
    %752 = vmatprep.subr.mxu0 0.0
    %753 = vmatpush1.msra.mxu0 0.0
    %754 = vmatprep.subr.mxu0 0.0
    %755 = vmatpush1.msra.mxu0 0.0
    %756 = vmatprep.subr.mxu0 0.0
    %757 = vmatpush1.msra.mxu0 0.0
    %758 = vmatprep.subr.mxu0 0.0
    %759 = vmatpush1.msra.mxu0 0.0
    %760 = vmatprep.subr.mxu0 0.0
    %761 = vmatpush1.msra.mxu0 0.0
    %762 = vmatprep.subr.mxu0 0.0
    %763 = vmatpush1.msra.mxu0 0.0
    %764 = vmatprep.subr.mxu0 0.0
    %765 = vmatpush1.msra.mxu0 0.0
    %766 = vmatprep.subr.mxu0 0.0
    %767 = vmatpush1.msra.mxu0 0.0
    %768 = vmatprep.subr.mxu0 0.0
    %769 = vmatpush1.msra.mxu0 0.0
    %770 = vmatprep.mubr.f32.mxu0 0.0
    %771 = vmatmul.mubr.f32.gmra.mrb[0].mxu0 %v704
    %v772 = vpop.f32.mrb[0].mxu0
    %v773 = vadd.f32 0.0, %v772
    %v774 = vpop.f32.mrb[0].mxu0
    %775 = vdwg.mxu0
    %v777 = vrot.slane %v773, 4
    %v779 = vadd.f32 %v169, %v777
    %v780 = vmul.f32 %v779, %v61
    %v781 = vtanh.pop %v780
    %v782 = vmul.f32 %v781, 0.5
    %v783 = vadd.f32 %v782, 0.5
    %v785 = vrot.slane %v692, 4
    %v787 = vmul.f32 %v783, %v785
    %789 = vrot.lane.b32.xlu0 %v781, 64
    %v790 = vpop.permute.xlu0 %789
    %v792 = vmul.f32 %v783, %v790
    %794 = vrot.lane.b32.xlu0 %v792, 32
    %v795 = vpop.permute.xlu0 %794
    %v797 = vadd.f32 %v787, %v795
    %v798 = vtanh.pop %v797
    %800 = vrot.lane.b32.xlu0 %v798, 64
    %v801 = vpop.permute.xlu0 %800
    %v803 = vmul.f32 %v783, %v801
    %805 = vrot.lane.b32.xlu0 %v803, 32
    %v806 = vpop.permute.xlu0 %805
    %808 = vst.msk [vmem:[#allocation2 + $0x10] sm:$0xf0] %vm387, %v806
    %v809 = vrot.slane %v803, 4
    %810 = vrot.lane.b32.xlu0 %v809, 32
    %v811 = vpop.permute.xlu0 %810
    %v812 = vsel %vm178, %v811, 0
    %814 = vmatprep.subr.mxu0 0.0
    %815 = vmatpush1.msra.mxu0 %v64
    %816 = vmatprep.subr.mxu0 0.0
    %817 = vmatpush1.msra.mxu0 %v65
    %818 = vmatprep.subr.mxu0 0.0
    %819 = vmatpush1.msra.mxu0 %v66
    %820 = vmatprep.subr.mxu0 0.0
    %821 = vmatpush1.msra.mxu0 %v67
    %822 = vmatprep.subr.mxu0 0.0
    %823 = vmatpush1.msra.mxu0 0.0
    %824 = vmatprep.subr.mxu0 0.0
    %825 = vmatpush1.msra.mxu0 0.0
    %826 = vmatprep.subr.mxu0 0.0
    %827 = vmatpush1.msra.mxu0 0.0
    %828 = vmatprep.subr.mxu0 0.0
    %829 = vmatpush1.msra.mxu0 0.0
    %830 = vmatprep.subr.mxu0 0.0
    %831 = vmatpush1.msra.mxu0 0.0
    %832 = vmatprep.subr.mxu0 0.0
    %833 = vmatpush1.msra.mxu0 0.0
    %834 = vmatprep.subr.mxu0 0.0
    %835 = vmatpush1.msra.mxu0 0.0
    %836 = vmatprep.subr.mxu0 0.0
    %837 = vmatpush1.msra.mxu0 0.0
    %838 = vmatprep.subr.mxu0 0.0
    %839 = vmatpush1.msra.mxu0 0.0
    %840 = vmatprep.subr.mxu0 0.0
    %841 = vmatpush1.msra.mxu0 0.0
    %842 = vmatprep.subr.mxu0 0.0
    %843 = vmatpush1.msra.mxu0 0.0
    %844 = vmatprep.subr.mxu0 0.0
    %845 = vmatpush1.msra.mxu0 0.0
    %846 = vmatprep.subr.mxu0 0.0
    %847 = vmatpush1.msra.mxu0 0.0
    %848 = vmatprep.subr.mxu0 0.0
    %849 = vmatpush1.msra.mxu0 0.0
    %850 = vmatprep.subr.mxu0 0.0
    %851 = vmatpush1.msra.mxu0 0.0
    %852 = vmatprep.subr.mxu0 0.0
    %853 = vmatpush1.msra.mxu0 0.0
    %854 = vmatprep.subr.mxu0 0.0
    %855 = vmatpush1.msra.mxu0 0.0
    %856 = vmatprep.subr.mxu0 0.0
    %857 = vmatpush1.msra.mxu0 0.0
    %858 = vmatprep.subr.mxu0 0.0
    %859 = vmatpush1.msra.mxu0 0.0
    %860 = vmatprep.subr.mxu0 0.0
    %861 = vmatpush1.msra.mxu0 0.0
    %862 = vmatprep.subr.mxu0 0.0
    %863 = vmatpush1.msra.mxu0 0.0
    %864 = vmatprep.subr.mxu0 0.0
    %865 = vmatpush1.msra.mxu0 0.0
    %866 = vmatprep.subr.mxu0 0.0
    %867 = vmatpush1.msra.mxu0 0.0
    %868 = vmatprep.subr.mxu0 0.0
    %869 = vmatpush1.msra.mxu0 0.0
    %870 = vmatprep.subr.mxu0 0.0
    %871 = vmatpush1.msra.mxu0 0.0
    %872 = vmatprep.subr.mxu0 0.0
    %873 = vmatpush1.msra.mxu0 0.0
    %874 = vmatprep.subr.mxu0 0.0
    %875 = vmatpush1.msra.mxu0 0.0
    %876 = vmatprep.subr.mxu0 0.0
    %877 = vmatpush1.msra.mxu0 0.0
    %878 = vmatprep.mubr.f32.mxu0 0.0
    %879 = vmatmul.mubr.f32.gmra.mrb[0].mxu0 %v812
    %v880 = vpop.f32.mrb[0].mxu0
    %v881 = vadd.f32 0.0, %v880
    %v882 = vpop.f32.mrb[0].mxu0
    %883 = vdwg.mxu0
    %v884 = vadd.f32 %v174, %v881
    %v885 = vmul.f32 %v884, %v61
    %v886 = vtanh.pop %v885
    %v887 = vmul.f32 %v886, 0.5
    %v888 = vadd.f32 %v887, 0.5
    %v890 = vrot.slane %v797, 4
    %v892 = vmul.f32 %v888, %v890
    %894 = vrot.lane.b32.xlu0 %v886, 64
    %v895 = vpop.permute.xlu0 %894
    %v897 = vmul.f32 %v888, %v895
    %899 = vrot.lane.b32.xlu0 %v897, 32
    %v900 = vpop.permute.xlu0 %899
    %v902 = vadd.f32 %v892, %v900
    %v903 = vtanh.pop %v902
    %905 = vrot.lane.b32.xlu0 %v903, 64
    %v906 = vpop.permute.xlu0 %905
    %v908 = vmul.f32 %v888, %v906
    %910 = vrot.lane.b32.xlu0 %v908, 32
    %v911 = vpop.permute.xlu0 %910
    %913 = vst.msk [vmem:[#allocation2 + $0x18] sm:$0xf] %vm281, %v911
    %v914 = vsel %vm178, %v911, 0
    %916 = vmatprep.subr.mxu0 0.0
    %917 = vmatpush1.msra.mxu0 %v64
    %918 = vmatprep.subr.mxu0 0.0
    %919 = vmatpush1.msra.mxu0 %v65
    %920 = vmatprep.subr.mxu0 0.0
    %921 = vmatpush1.msra.mxu0 %v66
    %922 = vmatprep.subr.mxu0 0.0
    %923 = vmatpush1.msra.mxu0 %v67
    %924 = vmatprep.subr.mxu0 0.0
    %925 = vmatpush1.msra.mxu0 0.0
    %926 = vmatprep.subr.mxu0 0.0
    %927 = vmatpush1.msra.mxu0 0.0
    %928 = vmatprep.subr.mxu0 0.0
    %929 = vmatpush1.msra.mxu0 0.0
    %930 = vmatprep.subr.mxu0 0.0
    %931 = vmatpush1.msra.mxu0 0.0
    %932 = vmatprep.subr.mxu0 0.0
    %933 = vmatpush1.msra.mxu0 0.0
    %934 = vmatprep.subr.mxu0 0.0
    %935 = vmatpush1.msra.mxu0 0.0
    %936 = vmatprep.subr.mxu0 0.0
    %937 = vmatpush1.msra.mxu0 0.0
    %938 = vmatprep.subr.mxu0 0.0
    %939 = vmatpush1.msra.mxu0 0.0
    %940 = vmatprep.subr.mxu0 0.0
    %941 = vmatpush1.msra.mxu0 0.0
    %942 = vmatprep.subr.mxu0 0.0
    %943 = vmatpush1.msra.mxu0 0.0
    %944 = vmatprep.subr.mxu0 0.0
    %945 = vmatpush1.msra.mxu0 0.0
    %946 = vmatprep.subr.mxu0 0.0
    %947 = vmatpush1.msra.mxu0 0.0
    %948 = vmatprep.subr.mxu0 0.0
    %949 = vmatpush1.msra.mxu0 0.0
    %950 = vmatprep.subr.mxu0 0.0
    %951 = vmatpush1.msra.mxu0 0.0
    %952 = vmatprep.subr.mxu0 0.0
    %953 = vmatpush1.msra.mxu0 0.0
    %954 = vmatprep.subr.mxu0 0.0
    %955 = vmatpush1.msra.mxu0 0.0
    %956 = vmatprep.subr.mxu0 0.0
    %957 = vmatpush1.msra.mxu0 0.0
    %958 = vmatprep.subr.mxu0 0.0
    %959 = vmatpush1.msra.mxu0 0.0
    %960 = vmatprep.subr.mxu0 0.0
    %961 = vmatpush1.msra.mxu0 0.0
    %962 = vmatprep.subr.mxu0 0.0
    %963 = vmatpush1.msra.mxu0 0.0
    %964 = vmatprep.subr.mxu0 0.0
    %965 = vmatpush1.msra.mxu0 0.0
    %966 = vmatprep.subr.mxu0 0.0
    %967 = vmatpush1.msra.mxu0 0.0
    %968 = vmatprep.subr.mxu0 0.0
    %969 = vmatpush1.msra.mxu0 0.0
    %970 = vmatprep.subr.mxu0 0.0
    %971 = vmatpush1.msra.mxu0 0.0
    %972 = vmatprep.subr.mxu0 0.0
    %973 = vmatpush1.msra.mxu0 0.0
    %974 = vmatprep.subr.mxu0 0.0
    %975 = vmatpush1.msra.mxu0 0.0
    %976 = vmatprep.subr.mxu0 0.0
    %977 = vmatpush1.msra.mxu0 0.0
    %978 = vmatprep.subr.mxu0 0.0
    %979 = vmatpush1.msra.mxu0 0.0
    %980 = vmatprep.mubr.f32.mxu0 0.0
    %981 = vmatmul.mubr.f32.gmra.mrb[0].mxu0 %v914
    %v982 = vpop.f32.mrb[0].mxu0
    %v983 = vadd.f32 0.0, %v982
    %v984 = vpop.f32.mrb[0].mxu0
    %985 = vdwg.mxu0
    %v987 = vrot.slane %v983, 4
    %v989 = vadd.f32 %v174, %v987
    %v990 = vmul.f32 %v989, %v61
    %v991 = vtanh.pop %v990
    %v992 = vmul.f32 %v991, 0.5
    %v993 = vadd.f32 %v992, 0.5
    %v995 = vrot.slane %v902, 4
    %v997 = vmul.f32 %v993, %v995
    %999 = vrot.lane.b32.xlu0 %v991, 64
    %v1000 = vpop.permute.xlu0 %999
    %v1002 = vmul.f32 %v993, %v1000
    %1004 = vrot.lane.b32.xlu0 %v1002, 32
    %v1005 = vpop.permute.xlu0 %1004
    %v1007 = vadd.f32 %v997, %v1005
    %v1008 = vtanh.pop %v1007
    %1010 = vrot.lane.b32.xlu0 %v1008, 64
    %v1011 = vpop.permute.xlu0 %1010
    %v1013 = vmul.f32 %v993, %v1011
    %1015 = vrot.lane.b32.xlu0 %v1013, 32
    %v1016 = vpop.permute.xlu0 %1015
    %1018 = vst.msk [vmem:[#allocation2 + $0x18] sm:$0xf0] %vm387, %v1016
    %v1019 = vld [vmem:[%s4] sm:$0xff]
    %v1020 = vld [vmem:[%s4 + $0x8] sm:$0xff]
    %v1021 = vld [vmem:[%s4 + $0x10] sm:$0xff]
    %v1022 = vld [vmem:[%s4 + $0x18] sm:$0xff]
    %v1023 = vld [vmem:[%s5] sm:$0xff]
    %v1024 = vld [vmem:[%s5 + $0x8] sm:$0xff]
    %v1025 = vld [vmem:[%s5 + $0x10] sm:$0xff]
    %v1026 = vld [vmem:[%s5 + $0x18] sm:$0xff]
    %v1027 = vld [vmem:[%s6] sm:$0x1]
    %v1028 = vld [vmem:[#allocation2] sm:$0xff]
    %v1029 = vld [vmem:[#allocation2 + $0x8] sm:$0xff]
    %v1030 = vld [vmem:[#allocation2 + $0x10] sm:$0xff]
    %v1031 = vld [vmem:[#allocation2 + $0x18] sm:$0xff]
    %v1033 = vlaneseq
    %v1034 = vshrl.u32 %v1033, 7
    %v1035 = vsub.s32 0, %v1034
    %v1036 = vrot.slane %v1027, %v1035
    %v1039 = vsel %vm178, %v1028, 0
    %v1042 = vsel %vm178, %v1029, 0
    %v1045 = vsel %vm178, %v1030, 0
    %v1048 = vsel %vm178, %v1031, 0
    %1050 = vmatprep.subr.mxu0 0.0
    %1051 = vmatpush1.msra.mxu0 %v1019
    %1052 = vmatprep.subr.mxu0 0.0
    %1053 = vmatpush1.msra.mxu0 %v1020
    %1054 = vmatprep.subr.mxu0 0.0
    %1055 = vmatpush1.msra.mxu0 %v1021
    %1056 = vmatprep.subr.mxu0 0.0
    %1057 = vmatpush1.msra.mxu0 %v1022
    %1058 = vmatprep.subr.mxu0 0.0
    %1059 = vmatpush1.msra.mxu0 0.0
    %1060 = vmatprep.subr.mxu0 0.0
    %1061 = vmatpush1.msra.mxu0 0.0
    %1062 = vmatprep.subr.mxu0 0.0
    %1063 = vmatpush1.msra.mxu0 0.0
    %1064 = vmatprep.subr.mxu0 0.0
    %1065 = vmatpush1.msra.mxu0 0.0
    %1066 = vmatprep.subr.mxu0 0.0
    %1067 = vmatpush1.msra.mxu0 0.0
    %1068 = vmatprep.subr.mxu0 0.0
    %1069 = vmatpush1.msra.mxu0 0.0
    %1070 = vmatprep.subr.mxu0 0.0
    %1071 = vmatpush1.msra.mxu0 0.0
    %1072 = vmatprep.subr.mxu0 0.0
    %1073 = vmatpush1.msra.mxu0 0.0
    %1074 = vmatprep.subr.mxu0 0.0
    %1075 = vmatpush1.msra.mxu0 0.0
    %1076 = vmatprep.subr.mxu0 0.0
    %1077 = vmatpush1.msra.mxu0 0.0
    %1078 = vmatprep.subr.mxu0 0.0
    %1079 = vmatpush1.msra.mxu0 0.0
    %1080 = vmatprep.subr.mxu0 0.0
    %1081 = vmatpush1.msra.mxu0 0.0
    %1082 = vmatprep.subr.mxu0 0.0
    %1083 = vmatpush1.msra.mxu0 0.0
    %1084 = vmatprep.subr.mxu0 0.0
    %1085 = vmatpush1.msra.mxu0 0.0
    %1086 = vmatprep.subr.mxu0 0.0
    %1087 = vmatpush1.msra.mxu0 0.0
    %1088 = vmatprep.subr.mxu0 0.0
    %1089 = vmatpush1.msra.mxu0 0.0
    %1090 = vmatprep.subr.mxu0 0.0
    %1091 = vmatpush1.msra.mxu0 0.0
    %1092 = vmatprep.subr.mxu0 0.0
    %1093 = vmatpush1.msra.mxu0 0.0
    %1094 = vmatprep.subr.mxu0 0.0
    %1095 = vmatpush1.msra.mxu0 0.0
    %1096 = vmatprep.subr.mxu0 0.0
    %1097 = vmatpush1.msra.mxu0 0.0
    %1098 = vmatprep.subr.mxu0 0.0
    %1099 = vmatpush1.msra.mxu0 0.0
    %1100 = vmatprep.subr.mxu0 0.0
    %1101 = vmatpush1.msra.mxu0 0.0
    %1102 = vmatprep.subr.mxu0 0.0
    %1103 = vmatpush1.msra.mxu0 0.0
    %1104 = vmatprep.subr.mxu0 0.0
    %1105 = vmatpush1.msra.mxu0 0.0
    %1106 = vmatprep.subr.mxu0 0.0
    %1107 = vmatpush1.msra.mxu0 0.0
    %1108 = vmatprep.subr.mxu0 0.0
    %1109 = vmatpush1.msra.mxu0 0.0
    %1110 = vmatprep.subr.mxu0 0.0
    %1111 = vmatpush1.msra.mxu0 0.0
    %1112 = vmatprep.subr.mxu0 0.0
    %1113 = vmatpush1.msra.mxu0 0.0
    %1114 = vmatprep.mubr.f32.mxu0 0.0
    %1115 = vmatmul.mubr.f32.gmra.mrb[0].mxu0 %v1039
    %v1116 = vpop.f32.mrb[0].mxu0
    %v1117 = vadd.f32 %v1036, %v1116
    %v1118 = vpop.f32.mrb[0].mxu0
    %1119 = vmatprep.mubr.f32.mxu0 0.0
    %1120 = vmatmul.mubr.f32.gmra.mrb[0].mxu0 %v1042
    %v1121 = vpop.f32.mrb[0].mxu0
    %v1122 = vadd.f32 %v1036, %v1121
    %v1123 = vpop.f32.mrb[0].mxu0
    %1124 = vmatprep.mubr.f32.mxu0 0.0
    %1125 = vmatmul.mubr.f32.gmra.mrb[0].mxu0 %v1045
    %v1126 = vpop.f32.mrb[0].mxu0
    %v1127 = vadd.f32 %v1036, %v1126
    %v1128 = vpop.f32.mrb[0].mxu0
    %1129 = vmatprep.mubr.f32.mxu0 0.0
    %1130 = vmatmul.mubr.f32.gmra.mrb[0].mxu0 %v1048
    %v1131 = vpop.f32.mrb[0].mxu0
    %v1132 = vadd.f32 %v1036, %v1131
    %v1133 = vpop.f32.mrb[0].mxu0
    %1134 = vdwg.mxu0
    %s1135 = scalar_lea.vmem %s7, 4
    %v1136 = vld [vmem:[%s1135] sm:$0xf]
    %v1138 = vsel %vm178, %v1136, 0
    %1140 = vmatprep.subr.mxu0 0.0
    %1141 = vmatpush1.msra.mxu0 %v1023
    %1142 = vmatprep.subr.mxu0 0.0
    %1143 = vmatpush1.msra.mxu0 %v1024
    %1144 = vmatprep.subr.mxu0 0.0
    %1145 = vmatpush1.msra.mxu0 %v1025
    %1146 = vmatprep.subr.mxu0 0.0
    %1147 = vmatpush1.msra.mxu0 %v1026
    %1148 = vmatprep.subr.mxu0 0.0
    %1149 = vmatpush1.msra.mxu0 0.0
    %1150 = vmatprep.subr.mxu0 0.0
    %1151 = vmatpush1.msra.mxu0 0.0
    %1152 = vmatprep.subr.mxu0 0.0
    %1153 = vmatpush1.msra.mxu0 0.0
    %1154 = vmatprep.subr.mxu0 0.0
    %1155 = vmatpush1.msra.mxu0 0.0
    %1156 = vmatprep.subr.mxu0 0.0
    %1157 = vmatpush1.msra.mxu0 0.0
    %1158 = vmatprep.subr.mxu0 0.0
    %1159 = vmatpush1.msra.mxu0 0.0
    %1160 = vmatprep.subr.mxu0 0.0
    %1161 = vmatpush1.msra.mxu0 0.0
    %1162 = vmatprep.subr.mxu0 0.0
    %1163 = vmatpush1.msra.mxu0 0.0
    %1164 = vmatprep.subr.mxu0 0.0
    %1165 = vmatpush1.msra.mxu0 0.0
    %1166 = vmatprep.subr.mxu0 0.0
    %1167 = vmatpush1.msra.mxu0 0.0
    %1168 = vmatprep.subr.mxu0 0.0
    %1169 = vmatpush1.msra.mxu0 0.0
    %1170 = vmatprep.subr.mxu0 0.0
    %1171 = vmatpush1.msra.mxu0 0.0
    %1172 = vmatprep.subr.mxu0 0.0
    %1173 = vmatpush1.msra.mxu0 0.0
    %1174 = vmatprep.subr.mxu0 0.0
    %1175 = vmatpush1.msra.mxu0 0.0
    %1176 = vmatprep.subr.mxu0 0.0
    %1177 = vmatpush1.msra.mxu0 0.0
    %1178 = vmatprep.subr.mxu0 0.0
    %1179 = vmatpush1.msra.mxu0 0.0
    %1180 = vmatprep.subr.mxu0 0.0
    %1181 = vmatpush1.msra.mxu0 0.0
    %1182 = vmatprep.subr.mxu0 0.0
    %1183 = vmatpush1.msra.mxu0 0.0
    %1184 = vmatprep.subr.mxu0 0.0
    %1185 = vmatpush1.msra.mxu0 0.0
    %1186 = vmatprep.subr.mxu0 0.0
    %1187 = vmatpush1.msra.mxu0 0.0
    %1188 = vmatprep.subr.mxu0 0.0
    %1189 = vmatpush1.msra.mxu0 0.0
    %1190 = vmatprep.subr.mxu0 0.0
    %1191 = vmatpush1.msra.mxu0 0.0
    %1192 = vmatprep.subr.mxu0 0.0
    %1193 = vmatpush1.msra.mxu0 0.0
    %1194 = vmatprep.subr.mxu0 0.0
    %1195 = vmatpush1.msra.mxu0 0.0
    %1196 = vmatprep.subr.mxu0 0.0
    %1197 = vmatpush1.msra.mxu0 0.0
    %1198 = vmatprep.subr.mxu0 0.0
    %1199 = vmatpush1.msra.mxu0 0.0
    %1200 = vmatprep.subr.mxu0 0.0
    %1201 = vmatpush1.msra.mxu0 0.0
    %1202 = vmatprep.subr.mxu0 0.0
    %1203 = vmatpush1.msra.mxu0 0.0
    %1204 = vmatprep.mubr.f32.mxu0 0.0
    %1205 = vmatmul.mubr.f32.gmra.mrb[0].mxu0 %v1138
    %v1206 = vpop.f32.mrb[0].mxu0
    %v1207 = vadd.f32 0.0, %v1206
    %v1208 = vpop.f32.mrb[0].mxu0
    %1209 = vdwg.mxu0
    %v1210 = vadd.f32 %v1117, %v1207
    %v1211 = vmul.f32 %v1210, %v61
    %v1212 = vtanh.pop %v1211
    %v1213 = vmul.f32 %v1212, 0.5
    %v1214 = vadd.f32 %v1213, 0.5
    %1215 = vrot.lane.b32.xlu0 %v1136, 32
    %v1216 = vpop.permute.xlu0 %1215
    %v1218 = vmul.f32 %v1214, %v1216
    %1220 = vrot.lane.b32.xlu0 %v1212, 64
    %v1221 = vpop.permute.xlu0 %1220
    %v1223 = vmul.f32 %v1214, %v1221
    %1225 = vrot.lane.b32.xlu0 %v1223, 32
    %v1226 = vpop.permute.xlu0 %1225
    %v1228 = vadd.f32 %v1218, %v1226
    %v1229 = vtanh.pop %v1228
    %1231 = vrot.lane.b32.xlu0 %v1229, 64
    %v1232 = vpop.permute.xlu0 %1231
    %v1234 = vmul.f32 %v1214, %v1232
    %1236 = vrot.lane.b32.xlu0 %v1234, 32
    %v1237 = vpop.permute.xlu0 %1236
    %v1238 = vsel %vm178, %v1237, 0
    %1240 = vmatprep.subr.mxu0 0.0
    %1241 = vmatpush1.msra.mxu0 %v1023
    %1242 = vmatprep.subr.mxu0 0.0
    %1243 = vmatpush1.msra.mxu0 %v1024
    %1244 = vmatprep.subr.mxu0 0.0
    %1245 = vmatpush1.msra.mxu0 %v1025
    %1246 = vmatprep.subr.mxu0 0.0
    %1247 = vmatpush1.msra.mxu0 %v1026
    %1248 = vmatprep.subr.mxu0 0.0
    %1249 = vmatpush1.msra.mxu0 0.0
    %1250 = vmatprep.subr.mxu0 0.0
    %1251 = vmatpush1.msra.mxu0 0.0
    %1252 = vmatprep.subr.mxu0 0.0
    %1253 = vmatpush1.msra.mxu0 0.0
    %1254 = vmatprep.subr.mxu0 0.0
    %1255 = vmatpush1.msra.mxu0 0.0
    %1256 = vmatprep.subr.mxu0 0.0
    %1257 = vmatpush1.msra.mxu0 0.0
    %1258 = vmatprep.subr.mxu0 0.0
    %1259 = vmatpush1.msra.mxu0 0.0
    %1260 = vmatprep.subr.mxu0 0.0
    %1261 = vmatpush1.msra.mxu0 0.0
    %1262 = vmatprep.subr.mxu0 0.0
    %1263 = vmatpush1.msra.mxu0 0.0
    %1264 = vmatprep.subr.mxu0 0.0
    %1265 = vmatpush1.msra.mxu0 0.0
    %1266 = vmatprep.subr.mxu0 0.0
    %1267 = vmatpush1.msra.mxu0 0.0
    %1268 = vmatprep.subr.mxu0 0.0
    %1269 = vmatpush1.msra.mxu0 0.0
    %1270 = vmatprep.subr.mxu0 0.0
    %1271 = vmatpush1.msra.mxu0 0.0
    %1272 = vmatprep.subr.mxu0 0.0
    %1273 = vmatpush1.msra.mxu0 0.0
    %1274 = vmatprep.subr.mxu0 0.0
    %1275 = vmatpush1.msra.mxu0 0.0
    %1276 = vmatprep.subr.mxu0 0.0
    %1277 = vmatpush1.msra.mxu0 0.0
    %1278 = vmatprep.subr.mxu0 0.0
    %1279 = vmatpush1.msra.mxu0 0.0
    %1280 = vmatprep.subr.mxu0 0.0
    %1281 = vmatpush1.msra.mxu0 0.0
    %1282 = vmatprep.subr.mxu0 0.0
    %1283 = vmatpush1.msra.mxu0 0.0
    %1284 = vmatprep.subr.mxu0 0.0
    %1285 = vmatpush1.msra.mxu0 0.0
    %1286 = vmatprep.subr.mxu0 0.0
    %1287 = vmatpush1.msra.mxu0 0.0
    %1288 = vmatprep.subr.mxu0 0.0
    %1289 = vmatpush1.msra.mxu0 0.0
    %1290 = vmatprep.subr.mxu0 0.0
    %1291 = vmatpush1.msra.mxu0 0.0
    %1292 = vmatprep.subr.mxu0 0.0
    %1293 = vmatpush1.msra.mxu0 0.0
    %1294 = vmatprep.subr.mxu0 0.0
    %1295 = vmatpush1.msra.mxu0 0.0
    %1296 = vmatprep.subr.mxu0 0.0
    %1297 = vmatpush1.msra.mxu0 0.0
    %1298 = vmatprep.subr.mxu0 0.0
    %1299 = vmatpush1.msra.mxu0 0.0
    %1300 = vmatprep.subr.mxu0 0.0
    %1301 = vmatpush1.msra.mxu0 0.0
    %1302 = vmatprep.subr.mxu0 0.0
    %1303 = vmatpush1.msra.mxu0 0.0
    %1304 = vmatprep.mubr.f32.mxu0 0.0
    %1305 = vmatmul.mubr.f32.gmra.mrb[0].mxu0 %v1238
    %v1306 = vpop.f32.mrb[0].mxu0
    %v1307 = vadd.f32 0.0, %v1306
    %v1308 = vpop.f32.mrb[0].mxu0
    %1309 = vdwg.mxu0
    %v1311 = vrot.slane %v1307, 4
    %v1313 = vadd.f32 %v1117, %v1311
    %v1314 = vmul.f32 %v1313, %v61
    %v1315 = vtanh.pop %v1314
    %v1316 = vmul.f32 %v1315, 0.5
    %v1317 = vadd.f32 %v1316, 0.5
    %v1319 = vrot.slane %v1228, 4
    %v1321 = vmul.f32 %v1317, %v1319
    %1323 = vrot.lane.b32.xlu0 %v1315, 64
    %v1324 = vpop.permute.xlu0 %1323
    %v1326 = vmul.f32 %v1317, %v1324
    %1328 = vrot.lane.b32.xlu0 %v1326, 32
    %v1329 = vpop.permute.xlu0 %1328
    %v1331 = vadd.f32 %v1321, %v1329
    %v1332 = vtanh.pop %v1331
    %1334 = vrot.lane.b32.xlu0 %v1332, 64
    %v1335 = vpop.permute.xlu0 %1334
    %v1337 = vmul.f32 %v1317, %v1335
    %v1339 = vrot.slane %v1337, 4
    %1340 = vrot.lane.b32.xlu0 %v1339, 32
    %v1341 = vpop.permute.xlu0 %1340
    %v1342 = vsel %vm178, %v1341, 0
    %1344 = vmatprep.subr.mxu0 0.0
    %1345 = vmatpush1.msra.mxu0 %v1023
    %1346 = vmatprep.subr.mxu0 0.0
    %1347 = vmatpush1.msra.mxu0 %v1024
    %1348 = vmatprep.subr.mxu0 0.0
    %1349 = vmatpush1.msra.mxu0 %v1025
    %1350 = vmatprep.subr.mxu0 0.0
    %1351 = vmatpush1.msra.mxu0 %v1026
    %1352 = vmatprep.subr.mxu0 0.0
    %1353 = vmatpush1.msra.mxu0 0.0
    %1354 = vmatprep.subr.mxu0 0.0
    %1355 = vmatpush1.msra.mxu0 0.0
    %1356 = vmatprep.subr.mxu0 0.0
    %1357 = vmatpush1.msra.mxu0 0.0
    %1358 = vmatprep.subr.mxu0 0.0
    %1359 = vmatpush1.msra.mxu0 0.0
    %1360 = vmatprep.subr.mxu0 0.0
    %1361 = vmatpush1.msra.mxu0 0.0
    %1362 = vmatprep.subr.mxu0 0.0
    %1363 = vmatpush1.msra.mxu0 0.0
    %1364 = vmatprep.subr.mxu0 0.0
    %1365 = vmatpush1.msra.mxu0 0.0
    %1366 = vmatprep.subr.mxu0 0.0
    %1367 = vmatpush1.msra.mxu0 0.0
    %1368 = vmatprep.subr.mxu0 0.0
    %1369 = vmatpush1.msra.mxu0 0.0
    %1370 = vmatprep.subr.mxu0 0.0
    %1371 = vmatpush1.msra.mxu0 0.0
    %1372 = vmatprep.subr.mxu0 0.0
    %1373 = vmatpush1.msra.mxu0 0.0
    %1374 = vmatprep.subr.mxu0 0.0
    %1375 = vmatpush1.msra.mxu0 0.0
    %1376 = vmatprep.subr.mxu0 0.0
    %1377 = vmatpush1.msra.mxu0 0.0
    %1378 = vmatprep.subr.mxu0 0.0
    %1379 = vmatpush1.msra.mxu0 0.0
    %1380 = vmatprep.subr.mxu0 0.0
    %1381 = vmatpush1.msra.mxu0 0.0
    %1382 = vmatprep.subr.mxu0 0.0
    %1383 = vmatpush1.msra.mxu0 0.0
    %1384 = vmatprep.subr.mxu0 0.0
    %1385 = vmatpush1.msra.mxu0 0.0
    %1386 = vmatprep.subr.mxu0 0.0
    %1387 = vmatpush1.msra.mxu0 0.0
    %1388 = vmatprep.subr.mxu0 0.0
    %1389 = vmatpush1.msra.mxu0 0.0
    %1390 = vmatprep.subr.mxu0 0.0
    %1391 = vmatpush1.msra.mxu0 0.0
    %1392 = vmatprep.subr.mxu0 0.0
    %1393 = vmatpush1.msra.mxu0 0.0
    %1394 = vmatprep.subr.mxu0 0.0
    %1395 = vmatpush1.msra.mxu0 0.0
    %1396 = vmatprep.subr.mxu0 0.0
    %1397 = vmatpush1.msra.mxu0 0.0
    %1398 = vmatprep.subr.mxu0 0.0
    %1399 = vmatpush1.msra.mxu0 0.0
    %1400 = vmatprep.subr.mxu0 0.0
    %1401 = vmatpush1.msra.mxu0 0.0
    %1402 = vmatprep.subr.mxu0 0.0
    %1403 = vmatpush1.msra.mxu0 0.0
    %1404 = vmatprep.subr.mxu0 0.0
    %1405 = vmatpush1.msra.mxu0 0.0
    %1406 = vmatprep.subr.mxu0 0.0
    %1407 = vmatpush1.msra.mxu0 0.0
    %1408 = vmatprep.mubr.f32.mxu0 0.0
    %1409 = vmatmul.mubr.f32.gmra.mrb[0].mxu0 %v1342
    %v1410 = vpop.f32.mrb[0].mxu0
    %v1411 = vadd.f32 0.0, %v1410
    %v1412 = vpop.f32.mrb[0].mxu0
    %1413 = vdwg.mxu0
    %v1414 = vadd.f32 %v1122, %v1411
    %v1415 = vmul.f32 %v1414, %v61
    %v1416 = vtanh.pop %v1415
    %v1417 = vmul.f32 %v1416, 0.5
    %v1418 = vadd.f32 %v1417, 0.5
    %v1420 = vrot.slane %v1331, 4
    %v1422 = vmul.f32 %v1418, %v1420
    %1424 = vrot.lane.b32.xlu0 %v1416, 64
    %v1425 = vpop.permute.xlu0 %1424
    %v1427 = vmul.f32 %v1418, %v1425
    %1429 = vrot.lane.b32.xlu0 %v1427, 32
    %v1430 = vpop.permute.xlu0 %1429
    %v1432 = vadd.f32 %v1422, %v1430
    %v1433 = vtanh.pop %v1432
    %1435 = vrot.lane.b32.xlu0 %v1433, 64
    %v1436 = vpop.permute.xlu0 %1435
    %v1438 = vmul.f32 %v1418, %v1436
    %1440 = vrot.lane.b32.xlu0 %v1438, 32
    %v1441 = vpop.permute.xlu0 %1440
    %v1442 = vsel %vm178, %v1441, 0
    %1444 = vmatprep.subr.mxu0 0.0
    %1445 = vmatpush1.msra.mxu0 %v1023
    %1446 = vmatprep.subr.mxu0 0.0
    %1447 = vmatpush1.msra.mxu0 %v1024
    %1448 = vmatprep.subr.mxu0 0.0
    %1449 = vmatpush1.msra.mxu0 %v1025
    %1450 = vmatprep.subr.mxu0 0.0
    %1451 = vmatpush1.msra.mxu0 %v1026
    %1452 = vmatprep.subr.mxu0 0.0
    %1453 = vmatpush1.msra.mxu0 0.0
    %1454 = vmatprep.subr.mxu0 0.0
    %1455 = vmatpush1.msra.mxu0 0.0
    %1456 = vmatprep.subr.mxu0 0.0
    %1457 = vmatpush1.msra.mxu0 0.0
    %1458 = vmatprep.subr.mxu0 0.0
    %1459 = vmatpush1.msra.mxu0 0.0
    %1460 = vmatprep.subr.mxu0 0.0
    %1461 = vmatpush1.msra.mxu0 0.0
    %1462 = vmatprep.subr.mxu0 0.0
    %1463 = vmatpush1.msra.mxu0 0.0
    %1464 = vmatprep.subr.mxu0 0.0
    %1465 = vmatpush1.msra.mxu0 0.0
    %1466 = vmatprep.subr.mxu0 0.0
    %1467 = vmatpush1.msra.mxu0 0.0
    %1468 = vmatprep.subr.mxu0 0.0
    %1469 = vmatpush1.msra.mxu0 0.0
    %1470 = vmatprep.subr.mxu0 0.0
    %1471 = vmatpush1.msra.mxu0 0.0
    %1472 = vmatprep.subr.mxu0 0.0
    %1473 = vmatpush1.msra.mxu0 0.0
    %1474 = vmatprep.subr.mxu0 0.0
    %1475 = vmatpush1.msra.mxu0 0.0
    %1476 = vmatprep.subr.mxu0 0.0
    %1477 = vmatpush1.msra.mxu0 0.0
    %1478 = vmatprep.subr.mxu0 0.0
    %1479 = vmatpush1.msra.mxu0 0.0
    %1480 = vmatprep.subr.mxu0 0.0
    %1481 = vmatpush1.msra.mxu0 0.0
    %1482 = vmatprep.subr.mxu0 0.0
    %1483 = vmatpush1.msra.mxu0 0.0
    %1484 = vmatprep.subr.mxu0 0.0
    %1485 = vmatpush1.msra.mxu0 0.0
    %1486 = vmatprep.subr.mxu0 0.0
    %1487 = vmatpush1.msra.mxu0 0.0
    %1488 = vmatprep.subr.mxu0 0.0
    %1489 = vmatpush1.msra.mxu0 0.0
    %1490 = vmatprep.subr.mxu0 0.0
    %1491 = vmatpush1.msra.mxu0 0.0
    %1492 = vmatprep.subr.mxu0 0.0
    %1493 = vmatpush1.msra.mxu0 0.0
    %1494 = vmatprep.subr.mxu0 0.0
    %1495 = vmatpush1.msra.mxu0 0.0
    %1496 = vmatprep.subr.mxu0 0.0
    %1497 = vmatpush1.msra.mxu0 0.0
    %1498 = vmatprep.subr.mxu0 0.0
    %1499 = vmatpush1.msra.mxu0 0.0
    %1500 = vmatprep.subr.mxu0 0.0
    %1501 = vmatpush1.msra.mxu0 0.0
    %1502 = vmatprep.subr.mxu0 0.0
    %1503 = vmatpush1.msra.mxu0 0.0
    %1504 = vmatprep.subr.mxu0 0.0
    %1505 = vmatpush1.msra.mxu0 0.0
    %1506 = vmatprep.subr.mxu0 0.0
    %1507 = vmatpush1.msra.mxu0 0.0
    %1508 = vmatprep.mubr.f32.mxu0 0.0
    %1509 = vmatmul.mubr.f32.gmra.mrb[0].mxu0 %v1442
    %v1510 = vpop.f32.mrb[0].mxu0
    %v1511 = vadd.f32 0.0, %v1510
    %v1512 = vpop.f32.mrb[0].mxu0
    %1513 = vdwg.mxu0
    %v1515 = vrot.slane %v1511, 4
    %v1517 = vadd.f32 %v1122, %v1515
    %v1518 = vmul.f32 %v1517, %v61
    %v1519 = vtanh.pop %v1518
    %v1520 = vmul.f32 %v1519, 0.5
    %v1521 = vadd.f32 %v1520, 0.5
    %v1523 = vrot.slane %v1432, 4
    %v1525 = vmul.f32 %v1521, %v1523
    %1527 = vrot.lane.b32.xlu0 %v1519, 64
    %v1528 = vpop.permute.xlu0 %1527
    %v1530 = vmul.f32 %v1521, %v1528
    %1532 = vrot.lane.b32.xlu0 %v1530, 32
    %v1533 = vpop.permute.xlu0 %1532
    %v1535 = vadd.f32 %v1525, %v1533
    %v1536 = vtanh.pop %v1535
    %1538 = vrot.lane.b32.xlu0 %v1536, 64
    %v1539 = vpop.permute.xlu0 %1538
    %v1541 = vmul.f32 %v1521, %v1539
    %v1543 = vrot.slane %v1541, 4
    %1544 = vrot.lane.b32.xlu0 %v1543, 32
    %v1545 = vpop.permute.xlu0 %1544
    %v1546 = vsel %vm178, %v1545, 0
    %1548 = vmatprep.subr.mxu0 0.0
    %1549 = vmatpush1.msra.mxu0 %v1023
    %1550 = vmatprep.subr.mxu0 0.0
    %1551 = vmatpush1.msra.mxu0 %v1024
    %1552 = vmatprep.subr.mxu0 0.0
    %1553 = vmatpush1.msra.mxu0 %v1025
    %1554 = vmatprep.subr.mxu0 0.0
    %1555 = vmatpush1.msra.mxu0 %v1026
    %1556 = vmatprep.subr.mxu0 0.0
    %1557 = vmatpush1.msra.mxu0 0.0
    %1558 = vmatprep.subr.mxu0 0.0
    %1559 = vmatpush1.msra.mxu0 0.0
    %1560 = vmatprep.subr.mxu0 0.0
    %1561 = vmatpush1.msra.mxu0 0.0
    %1562 = vmatprep.subr.mxu0 0.0
    %1563 = vmatpush1.msra.mxu0 0.0
    %1564 = vmatprep.subr.mxu0 0.0
    %1565 = vmatpush1.msra.mxu0 0.0
    %1566 = vmatprep.subr.mxu0 0.0
    %1567 = vmatpush1.msra.mxu0 0.0
    %1568 = vmatprep.subr.mxu0 0.0
    %1569 = vmatpush1.msra.mxu0 0.0
    %1570 = vmatprep.subr.mxu0 0.0
    %1571 = vmatpush1.msra.mxu0 0.0
    %1572 = vmatprep.subr.mxu0 0.0
    %1573 = vmatpush1.msra.mxu0 0.0
    %1574 = vmatprep.subr.mxu0 0.0
    %1575 = vmatpush1.msra.mxu0 0.0
    %1576 = vmatprep.subr.mxu0 0.0
    %1577 = vmatpush1.msra.mxu0 0.0
    %1578 = vmatprep.subr.mxu0 0.0
    %1579 = vmatpush1.msra.mxu0 0.0
    %1580 = vmatprep.subr.mxu0 0.0
    %1581 = vmatpush1.msra.mxu0 0.0
    %1582 = vmatprep.subr.mxu0 0.0
    %1583 = vmatpush1.msra.mxu0 0.0
    %1584 = vmatprep.subr.mxu0 0.0
    %1585 = vmatpush1.msra.mxu0 0.0
    %1586 = vmatprep.subr.mxu0 0.0
    %1587 = vmatpush1.msra.mxu0 0.0
    %1588 = vmatprep.subr.mxu0 0.0
    %1589 = vmatpush1.msra.mxu0 0.0
    %1590 = vmatprep.subr.mxu0 0.0
    %1591 = vmatpush1.msra.mxu0 0.0
    %1592 = vmatprep.subr.mxu0 0.0
    %1593 = vmatpush1.msra.mxu0 0.0
    %1594 = vmatprep.subr.mxu0 0.0
    %1595 = vmatpush1.msra.mxu0 0.0
    %1596 = vmatprep.subr.mxu0 0.0
    %1597 = vmatpush1.msra.mxu0 0.0
    %1598 = vmatprep.subr.mxu0 0.0
    %1599 = vmatpush1.msra.mxu0 0.0
    %1600 = vmatprep.subr.mxu0 0.0
    %1601 = vmatpush1.msra.mxu0 0.0
    %1602 = vmatprep.subr.mxu0 0.0
    %1603 = vmatpush1.msra.mxu0 0.0
    %1604 = vmatprep.subr.mxu0 0.0
    %1605 = vmatpush1.msra.mxu0 0.0
    %1606 = vmatprep.subr.mxu0 0.0
    %1607 = vmatpush1.msra.mxu0 0.0
    %1608 = vmatprep.subr.mxu0 0.0
    %1609 = vmatpush1.msra.mxu0 0.0
    %1610 = vmatprep.subr.mxu0 0.0
    %1611 = vmatpush1.msra.mxu0 0.0
    %1612 = vmatprep.mubr.f32.mxu0 0.0
    %1613 = vmatmul.mubr.f32.gmra.mrb[0].mxu0 %v1546
    %v1614 = vpop.f32.mrb[0].mxu0
    %v1615 = vadd.f32 0.0, %v1614
    %v1616 = vpop.f32.mrb[0].mxu0
    %1617 = vdwg.mxu0
    %v1618 = vadd.f32 %v1127, %v1615
    %v1619 = vmul.f32 %v1618, %v61
    %v1620 = vtanh.pop %v1619
    %v1621 = vmul.f32 %v1620, 0.5
    %v1622 = vadd.f32 %v1621, 0.5
    %v1624 = vrot.slane %v1535, 4
    %v1626 = vmul.f32 %v1622, %v1624
    %1628 = vrot.lane.b32.xlu0 %v1620, 64
    %v1629 = vpop.permute.xlu0 %1628
    %v1631 = vmul.f32 %v1622, %v1629
    %1633 = vrot.lane.b32.xlu0 %v1631, 32
    %v1634 = vpop.permute.xlu0 %1633
    %v1636 = vadd.f32 %v1626, %v1634
    %v1637 = vtanh.pop %v1636
    %1639 = vrot.lane.b32.xlu0 %v1637, 64
    %v1640 = vpop.permute.xlu0 %1639
    %v1642 = vmul.f32 %v1622, %v1640
    %1644 = vrot.lane.b32.xlu0 %v1642, 32
    %v1645 = vpop.permute.xlu0 %1644
    %v1646 = vsel %vm178, %v1645, 0
    %1648 = vmatprep.subr.mxu0 0.0
    %1649 = vmatpush1.msra.mxu0 %v1023
    %1650 = vmatprep.subr.mxu0 0.0
    %1651 = vmatpush1.msra.mxu0 %v1024
    %1652 = vmatprep.subr.mxu0 0.0
    %1653 = vmatpush1.msra.mxu0 %v1025
    %1654 = vmatprep.subr.mxu0 0.0
    %1655 = vmatpush1.msra.mxu0 %v1026
    %1656 = vmatprep.subr.mxu0 0.0
    %1657 = vmatpush1.msra.mxu0 0.0
    %1658 = vmatprep.subr.mxu0 0.0
    %1659 = vmatpush1.msra.mxu0 0.0
    %1660 = vmatprep.subr.mxu0 0.0
    %1661 = vmatpush1.msra.mxu0 0.0
    %1662 = vmatprep.subr.mxu0 0.0
    %1663 = vmatpush1.msra.mxu0 0.0
    %1664 = vmatprep.subr.mxu0 0.0
    %1665 = vmatpush1.msra.mxu0 0.0
    %1666 = vmatprep.subr.mxu0 0.0
    %1667 = vmatpush1.msra.mxu0 0.0
    %1668 = vmatprep.subr.mxu0 0.0
    %1669 = vmatpush1.msra.mxu0 0.0
    %1670 = vmatprep.subr.mxu0 0.0
    %1671 = vmatpush1.msra.mxu0 0.0
    %1672 = vmatprep.subr.mxu0 0.0
    %1673 = vmatpush1.msra.mxu0 0.0
    %1674 = vmatprep.subr.mxu0 0.0
    %1675 = vmatpush1.msra.mxu0 0.0
    %1676 = vmatprep.subr.mxu0 0.0
    %1677 = vmatpush1.msra.mxu0 0.0
    %1678 = vmatprep.subr.mxu0 0.0
    %1679 = vmatpush1.msra.mxu0 0.0
    %1680 = vmatprep.subr.mxu0 0.0
    %1681 = vmatpush1.msra.mxu0 0.0
    %1682 = vmatprep.subr.mxu0 0.0
    %1683 = vmatpush1.msra.mxu0 0.0
    %1684 = vmatprep.subr.mxu0 0.0
    %1685 = vmatpush1.msra.mxu0 0.0
    %1686 = vmatprep.subr.mxu0 0.0
    %1687 = vmatpush1.msra.mxu0 0.0
    %1688 = vmatprep.subr.mxu0 0.0
    %1689 = vmatpush1.msra.mxu0 0.0
    %1690 = vmatprep.subr.mxu0 0.0
    %1691 = vmatpush1.msra.mxu0 0.0
    %1692 = vmatprep.subr.mxu0 0.0
    %1693 = vmatpush1.msra.mxu0 0.0
    %1694 = vmatprep.subr.mxu0 0.0
    %1695 = vmatpush1.msra.mxu0 0.0
    %1696 = vmatprep.subr.mxu0 0.0
    %1697 = vmatpush1.msra.mxu0 0.0
    %1698 = vmatprep.subr.mxu0 0.0
    %1699 = vmatpush1.msra.mxu0 0.0
    %1700 = vmatprep.subr.mxu0 0.0
    %1701 = vmatpush1.msra.mxu0 0.0
    %1702 = vmatprep.subr.mxu0 0.0
    %1703 = vmatpush1.msra.mxu0 0.0
    %1704 = vmatprep.subr.mxu0 0.0
    %1705 = vmatpush1.msra.mxu0 0.0
    %1706 = vmatprep.subr.mxu0 0.0
    %1707 = vmatpush1.msra.mxu0 0.0
    %1708 = vmatprep.subr.mxu0 0.0
    %1709 = vmatpush1.msra.mxu0 0.0
    %1710 = vmatprep.subr.mxu0 0.0
    %1711 = vmatpush1.msra.mxu0 0.0
    %1712 = vmatprep.mubr.f32.mxu0 0.0
    %1713 = vmatmul.mubr.f32.gmra.mrb[0].mxu0 %v1646
    %v1714 = vpop.f32.mrb[0].mxu0
    %v1715 = vadd.f32 0.0, %v1714
    %v1716 = vpop.f32.mrb[0].mxu0
    %1717 = vdwg.mxu0
    %v1719 = vrot.slane %v1715, 4
    %v1721 = vadd.f32 %v1127, %v1719
    %v1722 = vmul.f32 %v1721, %v61
    %v1723 = vtanh.pop %v1722
    %v1724 = vmul.f32 %v1723, 0.5
    %v1725 = vadd.f32 %v1724, 0.5
    %v1727 = vrot.slane %v1636, 4
    %v1729 = vmul.f32 %v1725, %v1727
    %1731 = vrot.lane.b32.xlu0 %v1723, 64
    %v1732 = vpop.permute.xlu0 %1731
    %v1734 = vmul.f32 %v1725, %v1732
    %1736 = vrot.lane.b32.xlu0 %v1734, 32
    %v1737 = vpop.permute.xlu0 %1736
    %v1739 = vadd.f32 %v1729, %v1737
    %v1740 = vtanh.pop %v1739
    %1742 = vrot.lane.b32.xlu0 %v1740, 64
    %v1743 = vpop.permute.xlu0 %1742
    %v1745 = vmul.f32 %v1725, %v1743
    %v1747 = vrot.slane %v1745, 4
    %1748 = vrot.lane.b32.xlu0 %v1747, 32
    %v1749 = vpop.permute.xlu0 %1748
    %v1750 = vsel %vm178, %v1749, 0
    %1752 = vmatprep.subr.mxu0 0.0
    %1753 = vmatpush1.msra.mxu0 %v1023
    %1754 = vmatprep.subr.mxu0 0.0
    %1755 = vmatpush1.msra.mxu0 %v1024
    %1756 = vmatprep.subr.mxu0 0.0
    %1757 = vmatpush1.msra.mxu0 %v1025
    %1758 = vmatprep.subr.mxu0 0.0
    %1759 = vmatpush1.msra.mxu0 %v1026
    %1760 = vmatprep.subr.mxu0 0.0
    %1761 = vmatpush1.msra.mxu0 0.0
    %1762 = vmatprep.subr.mxu0 0.0
    %1763 = vmatpush1.msra.mxu0 0.0
    %1764 = vmatprep.subr.mxu0 0.0
    %1765 = vmatpush1.msra.mxu0 0.0
    %1766 = vmatprep.subr.mxu0 0.0
    %1767 = vmatpush1.msra.mxu0 0.0
    %1768 = vmatprep.subr.mxu0 0.0
    %1769 = vmatpush1.msra.mxu0 0.0
    %1770 = vmatprep.subr.mxu0 0.0
    %1771 = vmatpush1.msra.mxu0 0.0
    %1772 = vmatprep.subr.mxu0 0.0
    %1773 = vmatpush1.msra.mxu0 0.0
    %1774 = vmatprep.subr.mxu0 0.0
    %1775 = vmatpush1.msra.mxu0 0.0
    %1776 = vmatprep.subr.mxu0 0.0
    %1777 = vmatpush1.msra.mxu0 0.0
    %1778 = vmatprep.subr.mxu0 0.0
    %1779 = vmatpush1.msra.mxu0 0.0
    %1780 = vmatprep.subr.mxu0 0.0
    %1781 = vmatpush1.msra.mxu0 0.0
    %1782 = vmatprep.subr.mxu0 0.0
    %1783 = vmatpush1.msra.mxu0 0.0
    %1784 = vmatprep.subr.mxu0 0.0
    %1785 = vmatpush1.msra.mxu0 0.0
    %1786 = vmatprep.subr.mxu0 0.0
    %1787 = vmatpush1.msra.mxu0 0.0
    %1788 = vmatprep.subr.mxu0 0.0
    %1789 = vmatpush1.msra.mxu0 0.0
    %1790 = vmatprep.subr.mxu0 0.0
    %1791 = vmatpush1.msra.mxu0 0.0
    %1792 = vmatprep.subr.mxu0 0.0
    %1793 = vmatpush1.msra.mxu0 0.0
    %1794 = vmatprep.subr.mxu0 0.0
    %1795 = vmatpush1.msra.mxu0 0.0
    %1796 = vmatprep.subr.mxu0 0.0
    %1797 = vmatpush1.msra.mxu0 0.0
    %1798 = vmatprep.subr.mxu0 0.0
    %1799 = vmatpush1.msra.mxu0 0.0
    %1800 = vmatprep.subr.mxu0 0.0
    %1801 = vmatpush1.msra.mxu0 0.0
    %1802 = vmatprep.subr.mxu0 0.0
    %1803 = vmatpush1.msra.mxu0 0.0
    %1804 = vmatprep.subr.mxu0 0.0
    %1805 = vmatpush1.msra.mxu0 0.0
    %1806 = vmatprep.subr.mxu0 0.0
    %1807 = vmatpush1.msra.mxu0 0.0
    %1808 = vmatprep.subr.mxu0 0.0
    %1809 = vmatpush1.msra.mxu0 0.0
    %1810 = vmatprep.subr.mxu0 0.0
    %1811 = vmatpush1.msra.mxu0 0.0
    %1812 = vmatprep.subr.mxu0 0.0
    %1813 = vmatpush1.msra.mxu0 0.0
    %1814 = vmatprep.subr.mxu0 0.0
    %1815 = vmatpush1.msra.mxu0 0.0
    %1816 = vmatprep.mubr.f32.mxu0 0.0
    %1817 = vmatmul.mubr.f32.gmra.mrb[0].mxu0 %v1750
    %v1818 = vpop.f32.mrb[0].mxu0
    %v1819 = vadd.f32 0.0, %v1818
    %v1820 = vpop.f32.mrb[0].mxu0
    %1821 = vdwg.mxu0
    %v1822 = vadd.f32 %v1132, %v1819
    %v1823 = vmul.f32 %v1822, %v61
    %v1824 = vtanh.pop %v1823
    %v1825 = vmul.f32 %v1824, 0.5
    %v1826 = vadd.f32 %v1825, 0.5
    %v1828 = vrot.slane %v1739, 4
    %v1830 = vmul.f32 %v1826, %v1828
    %1832 = vrot.lane.b32.xlu0 %v1824, 64
    %v1833 = vpop.permute.xlu0 %1832
    %v1835 = vmul.f32 %v1826, %v1833
    %1837 = vrot.lane.b32.xlu0 %v1835, 32
    %v1838 = vpop.permute.xlu0 %1837
    %v1840 = vadd.f32 %v1830, %v1838
    %v1841 = vtanh.pop %v1840
    %1843 = vrot.lane.b32.xlu0 %v1841, 64
    %v1844 = vpop.permute.xlu0 %1843
    %v1846 = vmul.f32 %v1826, %v1844
    %1848 = vrot.lane.b32.xlu0 %v1846, 32
    %v1849 = vpop.permute.xlu0 %1848
    %v1850 = vsel %vm178, %v1849, 0
    %1852 = vmatprep.subr.mxu0 0.0
    %1853 = vmatpush1.msra.mxu0 %v1023
    %1854 = vmatprep.subr.mxu0 0.0
    %1855 = vmatpush1.msra.mxu0 %v1024
    %1856 = vmatprep.subr.mxu0 0.0
    %1857 = vmatpush1.msra.mxu0 %v1025
    %1858 = vmatprep.subr.mxu0 0.0
    %1859 = vmatpush1.msra.mxu0 %v1026
    %1860 = vmatprep.subr.mxu0 0.0
    %1861 = vmatpush1.msra.mxu0 0.0
    %1862 = vmatprep.subr.mxu0 0.0
    %1863 = vmatpush1.msra.mxu0 0.0
    %1864 = vmatprep.subr.mxu0 0.0
    %1865 = vmatpush1.msra.mxu0 0.0
    %1866 = vmatprep.subr.mxu0 0.0
    %1867 = vmatpush1.msra.mxu0 0.0
    %1868 = vmatprep.subr.mxu0 0.0
    %1869 = vmatpush1.msra.mxu0 0.0
    %1870 = vmatprep.subr.mxu0 0.0
    %1871 = vmatpush1.msra.mxu0 0.0
    %1872 = vmatprep.subr.mxu0 0.0
    %1873 = vmatpush1.msra.mxu0 0.0
    %1874 = vmatprep.subr.mxu0 0.0
    %1875 = vmatpush1.msra.mxu0 0.0
    %1876 = vmatprep.subr.mxu0 0.0
    %1877 = vmatpush1.msra.mxu0 0.0
    %1878 = vmatprep.subr.mxu0 0.0
    %1879 = vmatpush1.msra.mxu0 0.0
    %1880 = vmatprep.subr.mxu0 0.0
    %1881 = vmatpush1.msra.mxu0 0.0
    %1882 = vmatprep.subr.mxu0 0.0
    %1883 = vmatpush1.msra.mxu0 0.0
    %1884 = vmatprep.subr.mxu0 0.0
    %1885 = vmatpush1.msra.mxu0 0.0
    %1886 = vmatprep.subr.mxu0 0.0
    %1887 = vmatpush1.msra.mxu0 0.0
    %1888 = vmatprep.subr.mxu0 0.0
    %1889 = vmatpush1.msra.mxu0 0.0
    %1890 = vmatprep.subr.mxu0 0.0
    %1891 = vmatpush1.msra.mxu0 0.0
    %1892 = vmatprep.subr.mxu0 0.0
    %1893 = vmatpush1.msra.mxu0 0.0
    %1894 = vmatprep.subr.mxu0 0.0
    %1895 = vmatpush1.msra.mxu0 0.0
    %1896 = vmatprep.subr.mxu0 0.0
    %1897 = vmatpush1.msra.mxu0 0.0
    %1898 = vmatprep.subr.mxu0 0.0
    %1899 = vmatpush1.msra.mxu0 0.0
    %1900 = vmatprep.subr.mxu0 0.0
    %1901 = vmatpush1.msra.mxu0 0.0
    %1902 = vmatprep.subr.mxu0 0.0
    %1903 = vmatpush1.msra.mxu0 0.0
    %1904 = vmatprep.subr.mxu0 0.0
    %1905 = vmatpush1.msra.mxu0 0.0
    %1906 = vmatprep.subr.mxu0 0.0
    %1907 = vmatpush1.msra.mxu0 0.0
    %1908 = vmatprep.subr.mxu0 0.0
    %1909 = vmatpush1.msra.mxu0 0.0
    %1910 = vmatprep.subr.mxu0 0.0
    %1911 = vmatpush1.msra.mxu0 0.0
    %1912 = vmatprep.subr.mxu0 0.0
    %1913 = vmatpush1.msra.mxu0 0.0
    %1914 = vmatprep.subr.mxu0 0.0
    %1915 = vmatpush1.msra.mxu0 0.0
    %1916 = vmatprep.mubr.f32.mxu0 0.0
    %1917 = vmatmul.mubr.f32.gmra.mrb[0].mxu0 %v1850
    %v1918 = vpop.f32.mrb[0].mxu0
    %v1919 = vadd.f32 0.0, %v1918
    %v1920 = vpop.f32.mrb[0].mxu0
    %1921 = vdwg.mxu0
    %v1923 = vrot.slane %v1919, 4
    %v1925 = vadd.f32 %v1132, %v1923
    %v1926 = vmul.f32 %v1925, %v61
    %v1927 = vtanh.pop %v1926
    %v1928 = vmul.f32 %v1927, 0.5
    %v1929 = vadd.f32 %v1928, 0.5
    %v1931 = vrot.slane %v1840, 4
    %v1933 = vmul.f32 %v1929, %v1931
    %1935 = vrot.lane.b32.xlu0 %v1927, 64
    %v1936 = vpop.permute.xlu0 %1935
    %v1938 = vmul.f32 %v1929, %v1936
    %1940 = vrot.lane.b32.xlu0 %v1938, 32
    %v1941 = vpop.permute.xlu0 %1940
    %v1943 = vadd.f32 %v1933, %v1941
    %v1944 = vtanh.pop %v1943
    %1946 = vrot.lane.b32.xlu0 %v1944, 64
    %v1947 = vpop.permute.xlu0 %1946
    %v1949 = vmul.f32 %v1929, %v1947
    %v1951 = vrot.slane %v1949, 4
    %vm1953 = vcmask 1044224
    %v1954 = vsel %vm1953, %v1951, 0.0
    %v1955 = vrot.slane %v1954, 4
    %v1956 = vadd.f32 %v1954, %v1955
    %v1957 = vrot.slane %v1956, 2
    %v1958 = vadd.f32 %v1956, %v1957
    %v1959 = vrot.slane %v1958, 1
    %v1960 = vadd.f32 %v1958, %v1959
    %v1961 = vrcp.pop 4.0
    %v1962 = vmul.f32 %v1960, %v1961
    %v1963 = vsub.f32 %v1949, %v1962
    %v1964 = vmul.f32 %v1963, %v1963
    %v1966 = vrot.slane %v1964, 4
    %v1968 = vsel %vm1953, %v1966, 0.0
    %v1969 = vrot.slane %v1968, 4
    %v1970 = vadd.f32 %v1968, %v1969
    %v1971 = vrot.slane %v1970, 2
    %v1972 = vadd.f32 %v1970, %v1971
    %v1973 = vrot.slane %v1972, 1
    %v1974 = vadd.f32 %v1972, %v1973
    %v1975 = vmul.f32 %v1974, %v1961
    %v1976 = vadd.f32 %v1975, 1e-05
    %v1977 = vrsqrt.pop %v1976
    %v1978 = vmul.f32 %v1963, %v1977
    %v1979 = vld [vmem:[%s8] sm:$0x1]
    %v1981 = vlaneseq
    %v1982 = vshrl.u32 %v1981, 7
    %v1983 = vsub.s32 0, %v1982
    %v1984 = vrot.slane %v1979, %v1983
    %1985 = vrot.lane.b32.xlu0 %v1984, 96
    %v1986 = vpop.permute.xlu0 %1985
    %v1988 = vmul.f32 %v1978, %v1986
    %v1989 = vld [vmem:[%s9] sm:$0x1]
    %v1991 = vlaneseq
    %v1992 = vshrl.u32 %v1991, 7
    %v1993 = vsub.s32 0, %v1992
    %v1994 = vrot.slane %v1989, %v1993
    %1995 = vrot.lane.b32.xlu0 %v1994, 96
    %v1996 = vpop.permute.xlu0 %1995
    %v1998 = vadd.f32 %v1988, %v1996
    %v1999 = vtanh.pop %v1998
    %v2000 = vld [vmem:[%s10] sm:$0xff]
    %v2001 = vld [vmem:[%s10 + $0x8] sm:$0xff]
    %v2002 = vld [vmem:[%s10 + $0x10] sm:$0xff]
    %v2003 = vld [vmem:[%s10 + $0x18] sm:$0xff]
    %v2004 = vld [vmem:[%s11] sm:$0x1]
    %v2006 = vlaneseq
    %v2007 = vshrl.u32 %v2006, 7
    %v2008 = vsub.s32 0, %v2007
    %v2009 = vrot.slane %v2004, %v2008
    %v2012 = vrot.slane %v1999, 4
    %2013 = vrot.lane.b32.xlu0 %v2012, 32
    %v2014 = vpop.permute.xlu0 %2013
    %v2015 = vsel %vm178, %v2014, 0
    %2017 = vmatprep.subr.mxu0 0.0
    %2018 = vmatpush1.msra.mxu0 %v2000
    %2019 = vmatprep.subr.mxu0 0.0
    %2020 = vmatpush1.msra.mxu0 %v2001
    %2021 = vmatprep.subr.mxu0 0.0
    %2022 = vmatpush1.msra.mxu0 %v2002
    %2023 = vmatprep.subr.mxu0 0.0
    %2024 = vmatpush1.msra.mxu0 %v2003
    %2025 = vmatprep.subr.mxu0 0.0
    %2026 = vmatpush1.msra.mxu0 0.0
    %2027 = vmatprep.subr.mxu0 0.0
    %2028 = vmatpush1.msra.mxu0 0.0
    %2029 = vmatprep.subr.mxu0 0.0
    %2030 = vmatpush1.msra.mxu0 0.0
    %2031 = vmatprep.subr.mxu0 0.0
    %2032 = vmatpush1.msra.mxu0 0.0
    %2033 = vmatprep.subr.mxu0 0.0
    %2034 = vmatpush1.msra.mxu0 0.0
    %2035 = vmatprep.subr.mxu0 0.0
    %2036 = vmatpush1.msra.mxu0 0.0
    %2037 = vmatprep.subr.mxu0 0.0
    %2038 = vmatpush1.msra.mxu0 0.0
    %2039 = vmatprep.subr.mxu0 0.0
    %2040 = vmatpush1.msra.mxu0 0.0
    %2041 = vmatprep.subr.mxu0 0.0
    %2042 = vmatpush1.msra.mxu0 0.0
    %2043 = vmatprep.subr.mxu0 0.0
    %2044 = vmatpush1.msra.mxu0 0.0
    %2045 = vmatprep.subr.mxu0 0.0
    %2046 = vmatpush1.msra.mxu0 0.0
    %2047 = vmatprep.subr.mxu0 0.0
    %2048 = vmatpush1.msra.mxu0 0.0
    %2049 = vmatprep.subr.mxu0 0.0
    %2050 = vmatpush1.msra.mxu0 0.0
    %2051 = vmatprep.subr.mxu0 0.0
    %2052 = vmatpush1.msra.mxu0 0.0
    %2053 = vmatprep.subr.mxu0 0.0
    %2054 = vmatpush1.msra.mxu0 0.0
    %2055 = vmatprep.subr.mxu0 0.0
    %2056 = vmatpush1.msra.mxu0 0.0
    %2057 = vmatprep.subr.mxu0 0.0
    %2058 = vmatpush1.msra.mxu0 0.0
    %2059 = vmatprep.subr.mxu0 0.0
    %2060 = vmatpush1.msra.mxu0 0.0
    %2061 = vmatprep.subr.mxu0 0.0
    %2062 = vmatpush1.msra.mxu0 0.0
    %2063 = vmatprep.subr.mxu0 0.0
    %2064 = vmatpush1.msra.mxu0 0.0
    %2065 = vmatprep.subr.mxu0 0.0
    %2066 = vmatpush1.msra.mxu0 0.0
    %2067 = vmatprep.subr.mxu0 0.0
    %2068 = vmatpush1.msra.mxu0 0.0
    %2069 = vmatprep.subr.mxu0 0.0
    %2070 = vmatpush1.msra.mxu0 0.0
    %2071 = vmatprep.subr.mxu0 0.0
    %2072 = vmatpush1.msra.mxu0 0.0
    %2073 = vmatprep.subr.mxu0 0.0
    %2074 = vmatpush1.msra.mxu0 0.0
    %2075 = vmatprep.subr.mxu0 0.0
    %2076 = vmatpush1.msra.mxu0 0.0
    %2077 = vmatprep.subr.mxu0 0.0
    %2078 = vmatpush1.msra.mxu0 0.0
    %2079 = vmatprep.subr.mxu0 0.0
    %2080 = vmatpush1.msra.mxu0 0.0
    %2081 = vmatprep.mubr.f32.mxu0 0.0
    %2082 = vmatmul.mubr.f32.gmra.mrb[0].mxu0 %v2015
    %v2083 = vpop.f32.mrb[0].mxu0
    %v2084 = vadd.f32 %v2009, %v2083
    %v2085 = vpop.f32.mrb[0].mxu0
    %2086 = vdwg.mxu0
    %vm2087 = vcmask 76800
    %2088 = vst.msk [vmem:[#allocation6] sm:$0xf] %vm2087, %v2084
    // Predicated region
    $region54: #{tpu_custom_call.1} parent=1 // pred_check
      _
    $region55: #{tpu_custom_call.1} parent=1 // pred_check_branch
      %2090 = sbr.rel (0) target = $region57
    $region56: #{tpu_custom_call.1} parent=1 // pred_region
      %s2092 = ssub.s32 64, 64
      %2093 = vsyncadd [#allocation5], %s2092
      %s2095 = sshll.u32 [#allocation6], 4
      %s2096 = int_to_ptr.vmem [resolvable:$true] %s2095
      %2098 = dma.vmem_to_hbm [thread:$0]  %s2096, 64, %s12, [#allocation5]
    $region57: #{tpu_custom_call.1} parent=1 // pred_fallthru
      _
    // Predicated region
    $region58: #{tpu_custom_call.1} parent=1 // pred_check
      _
    $region59: #{tpu_custom_call.1} parent=1 // pred_check_branch
      %2100 = sbr.rel (0) target = $region61
    $region60: #{tpu_custom_call.1} parent=1 // pred_region
      %2101 = dma.done [#allocation5], 64
    $region61: #{tpu_custom_call.1} parent=1 // pred_fallthru
      _
    %2102 = vsyncpa [#allocation4], 1
    %2103 = vsyncpa [#allocation5], 1

</llo_original>
